<compile_context>
chip_gen: v5e
topology: v5e:2x2
jax: 0.10.0
libtpu: 0.0.40
codegen_flags: <defaults>
</compile_context>

<pallas_src>
import functools
import math
import re

import jax
import jax.numpy as jnp
import numpy as np
from jax.experimental import pallas as pl
from jax.experimental.pallas import tpu as pltpu


# --------------------------------------------------------------------------------------
# Hardware-aware configuration (best effort; conservative fallbacks).
# --------------------------------------------------------------------------------------
@functools.lru_cache(maxsize=1)
def _tpu_generation_config():
    vmem_cap = None
    try:
        vmem_cap = int(pltpu.get_tpu_info().vmem_capacity_bytes)
    except Exception:
        pass
    gen = None
    try:
        m = re.search(r"(\d+)", str(jax.devices()[0].device_kind))
        if m:
            gen = int(m.group(1))
    except Exception:
        pass
    tight = ((vmem_cap is not None and vmem_cap <= 64 * 1024 * 1024)
             or (gen is not None and gen >= 7))
    if tight:
        # v7x-like: 64 MiB VMEM / TensorCore, 2 TensorCores sharing the "parallel" axis.
        cfg = dict(tile_budget=24 << 20, vmem_limit=40 << 20, min_steps=4,
                   target_pixels=2048)
    else:
        # v5e / v6e: 128 MiB physical VMEM, single TensorCore, mem-bound layer -> big tiles.
        cfg = dict(tile_budget=48 << 20, vmem_limit=96 << 20, min_steps=2,
                   target_pixels=4096)
    # bf16 VPU/EUP exists on v6e/v7x; keep the f32 epilogue on v5e (and when unknown).
    cfg["bf16_ew"] = (gen is not None and gen >= 6) or (gen is None and tight)
    return cfg


# --------------------------------------------------------------------------------------
# Kernels
# --------------------------------------------------------------------------------------
def _silu(y, approx):
    if approx and y.dtype == jnp.float32:
        # exp and the approximate reciprocal both use the EUP slot, freeing VALU slots.
        return y * pl.reciprocal(1.0 + jnp.exp(-y), approx=True)
    return y * jax.nn.sigmoid(y)  # exact sigmoid (f32) or bf16 VPU/EUP epilogue


def _deconv_kernel_taps(x_ref, w_ref, shift_ref, o_ref, *, k, tr, w_pix, kc2,
                        act_dtype, approx_act):
    """Per-tap matmuls.  Used when kc2 = k*c2 is NOT a multiple of 128.

    x_ref:     (tr*w_pix, c1)        activations (flattened NHWC pixel rows)
    w_ref:     (k, c1, kc2)          packed weights, BN scale folded in (resident)
    shift_ref: (1, kc2)              folded BN shift (f32)
    o_ref:     (tr, k, w_pix, kc2)   output slab, already in final NHWC element order
    """
    x = x_ref[...]
    shift = shift_ref[...]            # hoisted: loaded once, reused by every tap
    for a in range(k):                # static unroll; k == 2 for the default config
        y = jnp.dot(x, w_ref[a], preferred_element_type=jnp.float32)   # MXU, f32 acc
        y = (y + shift).astype(act_dtype)      # BN shift (scale already in the weights)
        y = _silu(y, approx_act).astype(o_ref.dtype)
        # (tr*w_pix, kc2) -> (tr, w_pix, kc2): last dim unchanged -> cheap shape cast.
        o_ref[:, a, :, :] = y.reshape(tr, w_pix, kc2)
    # TODO(synk): for kc2 < 128 these stores are partially masked (vst.msk); a lane-merge
    # relayout to a (tr, w_pix*kc2) slab (or channel padding) would make them dense, at the
    # cost of an in-register relayout — add if profiling shows the store path binds.


def _deconv_kernel_wide(x_ref, w_ref, shift_ref, o_ref, *, k, tr, w_pix, kc2,
                        act_dtype, approx_act):
    """Single wide matmul.  Used when kc2 % 128 == 0 (lane-aligned per-tap slices).

    x_ref:     (tr*w_pix, c1)
    w_ref:     (c1, k*kc2)           packed weights, BN scale folded in (resident)
    shift_ref: (1, k*kc2)            folded BN shift (f32)
    o_ref:     (tr, k, w_pix, kc2)
    """
    # One LHS stream / one MXU result drain instead of k; wider N fills the MXU better.
    y = jnp.dot(x_ref[...], w_ref[...], preferred_element_type=jnp.float32)
    y = (y + shift_ref[...]).astype(act_dtype)
    y = _silu(y, approx_act).astype(o_ref.dtype)
    for a in range(k):                # lane-aligned slices -> fully dense stores
        o_ref[:, a, :, :] = y[:, a * kc2:(a + 1) * kc2].reshape(tr, w_pix, kc2)


# --------------------------------------------------------------------------------------
# Wrappers
# --------------------------------------------------------------------------------------
def conv_transpose_bn_silu_nhwc(x_nhwc, w, gamma, beta, run_mean, run_var, *,
                                k=2, s=2, eps=1e-5,
                                compute_dtype=None, out_dtype=None, matmul_dtype=None,
                                approx_act=None, target_tile_pixels=None):
    """Fast path. x_nhwc: (N, H, W, C1); w: (C1, C2, k, k) (PyTorch ConvTranspose2d layout).

    Returns NHWC output (N, H*s, W*s, C2).  Keep the surrounding graph NHWC to avoid any
    layout shuffles around the kernel.
      compute_dtype : dtype of activations/weights fed to the kernel (default: x dtype).
      matmul_dtype  : MXU operand dtype only (e.g. bf16 operands + f32 accumulate/epilogue).
      approx_act    : force approximate SiLU; default = exact when compute dtype is f32.
    """
    assert k == s, "only the module's default config (k == s, p == 0) is supported"
    # TODO(synk): general k != s / p != 0 (overlapping taps) and training-mode BatchNorm
    # (batch statistics) are not implemented.
    n, h, wd, c1 = x_nhwc.shape
    c1_w, c2, kh, kw = w.shape
    assert (c1_w, kh, kw) == (c1, k, k)

    cfg = _tpu_generation_config()
    cdt = np.dtype(compute_dtype) if compute_dtype is not None else np.dtype(x_nhwc.dtype)
    odt = np.dtype(out_dtype) if out_dtype is not None else cdt
    mdt = np.dtype(matmul_dtype) if matmul_dtype is not None else cdt
    approx = (cdt != np.float32) if approx_act is None else bool(approx_act)
    # bf16 SiLU epilogue only where the VPU/EUP are bf16-native (v6e/v7x); f32 elsewhere.
    act_dt = jnp.bfloat16 if (odt == np.dtype(jnp.bfloat16) and cfg["bf16_ew"]) else jnp.float32

    kc2 = k * c2
    kkc2 = k * kc2
    r = n * h
    m = r * wd

    # Fold inference BatchNorm: the per-channel scale goes into the weights (f32 fold, then
    # cast), only the shift is applied in the kernel epilogue.
    scale_c = gamma.astype(jnp.float32) / jnp.sqrt(run_var.astype(jnp.float32) + eps)
    shift_c = beta.astype(jnp.float32) - run_mean.astype(jnp.float32) * scale_c

    x2d = x_nhwc.reshape(m, c1).astype(mdt)        # free reshape of contiguous NHWC

    wide = (kc2 % 128 == 0)
    if wide:
        # (c1, c2, a, b) -> columns ordered (a, b, co): col = a*kc2 + b*c2 + co.
        w_p = (jnp.transpose(w, (0, 2, 3, 1)).reshape(c1, kkc2).astype(jnp.float32)
               * jnp.tile(scale_c, k * k)[None, :]).astype(mdt)
        shift = jnp.tile(shift_c, k * k).reshape(1, kkc2)
    else:
        # (c1, c2, a, b) -> (a, c1, b*c2 + co).
        w_p = (jnp.transpose(w, (2, 0, 3, 1)).reshape(k, c1, kc2).astype(jnp.float32)
               * jnp.tile(scale_c, k)[None, None, :]).astype(mdt)
        shift = jnp.tile(shift_c, k).reshape(1, kc2)

    # ---------------- generation-aware tile sizing (per-buffer dtype sizes) -------------
    step = 8 // math.gcd(wd, 8)                    # tr granularity so that tr*wd % 8 == 0

    def _round_tr(t):
        return max(step, (int(t) // step) * step)

    def _need(tr_):                                # VMEM bytes needed for a tr_-row tile
        tm_ = tr_ * wd
        return (2 * tm_ * c1 * mdt.itemsize        # double-buffered activation tile
                + 2 * tm_ * kkc2 * odt.itemsize    # double-buffered output slab
                + 2 * c1 * kkc2 * mdt.itemsize     # weights (double-buffered, resident)
                + tm_ * kkc2 * 4                   # f32 matmul / epilogue intermediates
                + 4 * kkc2 * 4)                    # BN shift
    # TODO(synk): pl.Buffered(1) on the resident weight/shift specs (and Buffered(3) on the
    # output stream if the writeback DMA is exposed) would free / add buffers; left at the
    # defaults here and accounted for in the budget instead.

    target_px = target_tile_pixels if target_tile_pixels is not None else cfg["target_pixels"]
    tr_cap = -(-r // step) * step                  # r rounded up to the tr granularity
    tr = min(tr_cap, _round_tr(max(step, target_px // wd)))
    # Keep >= min_steps grid steps: pipelining everywhere, TensorCore sharding on v7x.
    tr = min(tr, _round_tr(-(-r // cfg["min_steps"])))
    while _need(tr) > cfg["tile_budget"] and tr > step:
        tr = _round_tr(tr // 2)
    tm = tr * wd
    grid = (pl.cdiv(r, tr),)

    if wide:
        kernel = functools.partial(_deconv_kernel_wide, k=k, tr=tr, w_pix=wd, kc2=kc2,
                                   act_dtype=act_dt, approx_act=approx)
        w_spec = pl.BlockSpec((c1, kkc2), lambda i: (0, 0))
        shift_spec = pl.BlockSpec((1, kkc2), lambda i: (0, 0))
    else:
        kernel = functools.partial(_deconv_kernel_taps, k=k, tr=tr, w_pix=wd, kc2=kc2,
                                   act_dtype=act_dt, approx_act=approx)
        w_spec = pl.BlockSpec((k, c1, kc2), lambda i: (0, 0, 0))
        shift_spec = pl.BlockSpec((1, kc2), lambda i: (0, 0))

    out4 = pl.pallas_call(
        kernel,
        out_shape=jax.ShapeDtypeStruct((r, k, wd, kc2), odt),
        grid_spec=pltpu.PrefetchScalarGridSpec(
            num_scalar_prefetch=0,
            grid=grid,
            in_specs=[
                pl.BlockSpec((tm, c1), lambda i: (i, 0)),   # activations tile
                w_spec,                                     # weights (resident)
                shift_spec,                                 # folded BN shift (resident)
            ],
            out_specs=pl.BlockSpec((tr, k, wd, kc2), lambda i: (i, 0, 0, 0)),
        ),
        compiler_params=pltpu.CompilerParams(
            dimension_semantics=("parallel",),
            vmem_limit_bytes=cfg["vmem_limit"],
        ),
        cost_estimate=pl.CostEstimate(
            flops=2 * m * c1 * kkc2,
            transcendentals=m * kkc2,
            bytes_accessed=(m * c1 + c1 * kkc2) * mdt.itemsize + m * kkc2 * odt.itemsize,
        ),
    )(x2d, w_p, shift)
    # (N*H, k, W, k*C2) already has NHWC element order -> pure (free) reshape.
    return out4.reshape(n, h * k, wd * k, c2)


def conv_transpose_bn_silu(x_nchw, w, gamma, beta, run_mean, run_var, **kwargs):
    """PyTorch-interface wrapper: NCHW in, NCHW out (matches ConvTranspose.forward).

    The two transposes here are interface adapters only; call the NHWC entry point
    directly if the surrounding graph is NHWC.
    """
    x_nhwc = jnp.transpose(x_nchw, (0, 2, 3, 1))
    y_nhwc = conv_transpose_bn_silu_nhwc(x_nhwc, w, gamma, beta, run_mean, run_var, **kwargs)
    return jnp.transpose(y_nhwc, (0, 3, 1, 2))


# --------------------------------------------------------------------------------------
# Reference & tests
# --------------------------------------------------------------------------------------
def _reference(x, w, gamma, beta, mean, var, k=2, s=2, eps=1e-5):
    """Independent NCHW reference: explicit stride-s scatter of per-tap matmuls + BN + SiLU."""
    n, c1, h, wd = x.shape
    c2 = w.shape[1]
    out = jnp.zeros((n, c2, h * s, wd * s), jnp.float32)
    for a in range(k):
        for b in range(k):
            contrib = jnp.einsum('nchw,cd->ndhw', x, w[:, :, a, b])
            out = out.at[:, :, a::s, b::s].add(contrib)
    scale = gamma / jnp.sqrt(var + eps)
    shift = beta - mean * scale
    out = out * scale[None, :, None, None] + shift[None, :, None, None]
    return out * jax.nn.sigmoid(out)


def _make_bn(key, c2):
    k_g, k_b, k_m, k_v = jax.random.split(key, 4)
    gamma = 1.0 + 0.1 * jax.random.normal(k_g, (c2,), jnp.float32)
    beta = 0.1 * jax.random.normal(k_b, (c2,), jnp.float32)
    mean = 0.05 * jax.random.normal(k_m, (c2,), jnp.float32)
    var = 1.0 + 0.1 * jax.nn.softplus(jax.random.normal(k_v, (c2,), jnp.float32))
    return gamma, beta, mean, var


if __name__ == "__main__":
    key = jax.random.PRNGKey(0)
    k_x, k_w, k_bn, k_x2, k_x3, k_w3, k_bn3 = jax.random.split(key, 7)

    # ---- config matching the module defaults: ConvTranspose(c1=4, c2=8, k=2, s=2) ----
    N, C1, H, W = 2, 4, 16, 16
    C2, K, S = 8, 2, 2
    x = jax.random.normal(k_x, (N, C1, H, W), jnp.float32)
    w = jax.random.normal(k_w, (C1, C2, K, K), jnp.float32) * 0.1      # ConvTranspose2d weight
    gamma, beta, run_mean, run_var = _make_bn(k_bn, C2)

    ref = jax.block_until_ready(_reference(x, w, gamma, beta, run_mean, run_var, k=K, s=S))

    # 1) Exact-semantics f32 path (matches the PyTorch module numerics).
    out = jax.block_until_ready(
        conv_transpose_bn_silu(x, w, gamma, beta, run_mean, run_var, k=K, s=S))
    assert out.shape == (N, C2, H * S, W * S), out.shape
    assert jnp.allclose(out, ref, rtol=1e-5, atol=1e-5), float(jnp.max(jnp.abs(out - ref)))

    # 2) bf16 traffic-reduced path (halves HBM bytes on this mem-bound layer).
    out_bf16 = jax.block_until_ready(
        conv_transpose_bn_silu(x, w, gamma, beta, run_mean, run_var, k=K, s=S,
                               compute_dtype=jnp.bfloat16))
    assert out_bf16.dtype == jnp.bfloat16
    assert jnp.allclose(out_bf16.astype(jnp.float32), ref, rtol=5e-2, atol=5e-2), \
        float(jnp.max(jnp.abs(out_bf16.astype(jnp.float32) - ref)))

    # 3) Mixed mode: bf16 MXU operands, f32 accumulation + f32 epilogue/output.
    out_mix = jax.block_until_ready(
        conv_transpose_bn_silu(x, w, gamma, beta, run_mean, run_var, k=K, s=S,
                               matmul_dtype=jnp.bfloat16))
    assert out_mix.dtype == jnp.float32
    assert jnp.allclose(out_mix, ref, rtol=2e-2, atol=2e-2), \
        float(jnp.max(jnp.abs(out_mix - ref)))

    # 4) Ragged grid tail + W not a multiple of 8 (generalized path, forced small tiles).
    N2, H2, W2 = 2, 9, 12
    x2 = jax.random.normal(k_x2, (N2, C1, H2, W2), jnp.float32)
    ref2 = jax.block_until_ready(_reference(x2, w, gamma, beta, run_mean, run_var, k=K, s=S))
    out2 = jax.block_until_ready(
        conv_transpose_bn_silu(x2, w, gamma, beta, run_mean, run_var, k=K, s=S,
                               target_tile_pixels=48))
    assert out2.shape == (N2, C2, H2 * S, W2 * S), out2.shape
    assert jnp.allclose(out2, ref2, rtol=1e-5, atol=1e-5), float(jnp.max(jnp.abs(out2 - ref2)))

    # 5) Wide-matmul lane-dense path (k*c2 multiple of 128).
    N3, C13, H3, W3, C23 = 1, 8, 8, 8, 64
    x3 = jax.random.normal(k_x3, (N3, C13, H3, W3), jnp.float32)
    w3 = jax.random.normal(k_w3, (C13, C23, K, K), jnp.float32) * 0.1
    gamma3, beta3, mean3, var3 = _make_bn(k_bn3, C23)
    ref3 = jax.block_until_ready(_reference(x3, w3, gamma3, beta3, mean3, var3, k=K, s=S))
    out3 = jax.block_until_ready(
        conv_transpose_bn_silu(x3, w3, gamma3, beta3, mean3, var3, k=K, s=S))
    assert out3.shape == (N3, C23, H3 * S, W3 * S), out3.shape
    assert jnp.allclose(out3, ref3, rtol=1e-5, atol=1e-5), float(jnp.max(jnp.abs(out3 - ref3)))

    print("KERNEL_OK")
</pallas_src>

<mosaic_0001>
module attributes {stable_mosaic.version = 11 : i64} {
  func.func @_deconv_kernel_taps(%arg0: i32, %arg1: memref<256x4xf32, #tpu.memory_space<vmem>>, %arg2: memref<2x4x16xf32, #tpu.memory_space<vmem>>, %arg3: memref<1x16xf32, #tpu.memory_space<vmem>>, %arg4: memref<16x2x16x16xf32, #tpu.memory_space<vmem>>) attributes {dimension_semantics = [#tpu.dimension_semantics<parallel>], iteration_bounds = array<i64: 2>, scalar_prefetch = 0 : i64, scratch_operands = 0 : i64, tpu.core_type = #tpu.core_type<tc>, window_params = [{transform_indices = @transform_0, window_bounds = array<i64: 256, 4>}, {pipeline_mode = #tpu.pipeline_mode<synchronous>, transform_indices = @transform_1, window_bounds = array<i64: 2, 4, 16>}, {pipeline_mode = #tpu.pipeline_mode<synchronous>, transform_indices = @transform_2, window_bounds = array<i64: 1, 16>}, {transform_indices = @transform_3, window_bounds = array<i64: 16, 2, 16, 16>}]} {
    %c0 = arith.constant 0 : index
    %c0_0 = arith.constant 0 : index
    %0 = vector.load %arg1[%c0, %c0_0] : memref<256x4xf32, #tpu.memory_space<vmem>>, vector<256x4xf32>
    %c0_1 = arith.constant 0 : index
    %c0_2 = arith.constant 0 : index
    %1 = vector.load %arg3[%c0_1, %c0_2] : memref<1x16xf32, #tpu.memory_space<vmem>>, vector<1x16xf32>
    %c0_3 = arith.constant 0 : index
    %c0_4 = arith.constant 0 : index
    %c0_5 = arith.constant 0 : index
    %2 = vector.load %arg2[%c0_3, %c0_4, %c0_5] : memref<2x4x16xf32, #tpu.memory_space<vmem>>, vector<1x4x16xf32>
    %3 = vector.shape_cast %2 : vector<1x4x16xf32> to vector<4x16xf32>
    %cst = arith.constant dense<0.000000e+00> : vector<256x16xf32>
    %4 = tpu.matmul %0, %3, %cst {dimension_numbers = #tpu.dot_dimension_numbers<[1], [0], [0], [1], [0, 0, 1, 1], [], []>} : vector<256x4xf32>, vector<4x16xf32>, vector<256x16xf32> -> vector<256x16xf32>
    %5 = vector.broadcast %1 : vector<1x16xf32> to vector<256x16xf32>
    %6 = arith.addf %4, %5 : vector<256x16xf32>
    %7 = arith.negf %6 : vector<256x16xf32>
    %8 = math.exp %7 : vector<256x16xf32>
    %cst_6 = arith.constant 1.000000e+00 : f32
    %9 = vector.broadcast %cst_6 : f32 to vector<256x16xf32>
    %10 = arith.addf %9, %8 : vector<256x16xf32>
    %11 = arith.divf %9, %10 : vector<256x16xf32>
    %12 = arith.mulf %6, %11 : vector<256x16xf32>
    %13 = vector.shape_cast %12 : vector<256x16xf32> to vector<16x16x16xf32>
    %c0_7 = arith.constant 0 : index
    %c0_8 = arith.constant 0 : index
    %c0_9 = arith.constant 0 : index
    %c0_10 = arith.constant 0 : index
    %14 = vector.load %arg4[%c0_7, %c0_8, %c0_9, %c0_10] : memref<16x2x16x16xf32, #tpu.memory_space<vmem>>, vector<16x1x16x16xf32>
    %15 = vector.shape_cast %14 : vector<16x1x16x16xf32> to vector<16x16x16xf32>
    %16 = vector.shape_cast %13 : vector<16x16x16xf32> to vector<16x1x16x16xf32>
    tpu.vector_store %arg4[%c0_7, %c0_8, %c0_9, %c0_10], %16 {strides = array<i32>} : memref<16x2x16x16xf32, #tpu.memory_space<vmem>>, vector<16x1x16x16xf32>,
    %c1 = arith.constant 1 : index
    %c0_11 = arith.constant 0 : index
    %c0_12 = arith.constant 0 : index
    %17 = vector.load %arg2[%c1, %c0_11, %c0_12] : memref<2x4x16xf32, #tpu.memory_space<vmem>>, vector<1x4x16xf32>
    %18 = vector.shape_cast %17 : vector<1x4x16xf32> to vector<4x16xf32>
    %cst_13 = arith.constant dense<0.000000e+00> : vector<256x16xf32>
    %19 = tpu.matmul %0, %18, %cst_13 {dimension_numbers = #tpu.dot_dimension_numbers<[1], [0], [0], [1], [0, 0, 1, 1], [], []>} : vector<256x4xf32>, vector<4x16xf32>, vector<256x16xf32> -> vector<256x16xf32>
    %20 = vector.broadcast %1 : vector<1x16xf32> to vector<256x16xf32>
    %21 = arith.addf %19, %20 : vector<256x16xf32>
    %22 = arith.negf %21 : vector<256x16xf32>
    %23 = math.exp %22 : vector<256x16xf32>
    %cst_14 = arith.constant 1.000000e+00 : f32
    %24 = vector.broadcast %cst_14 : f32 to vector<256x16xf32>
    %25 = arith.addf %24, %23 : vector<256x16xf32>
    %26 = arith.divf %24, %25 : vector<256x16xf32>
    %27 = arith.mulf %21, %26 : vector<256x16xf32>
    %28 = vector.shape_cast %27 : vector<256x16xf32> to vector<16x16x16xf32>
    %c0_15 = arith.constant 0 : index
    %c1_16 = arith.constant 1 : index
    %c0_17 = arith.constant 0 : index
    %c0_18 = arith.constant 0 : index
    %29 = vector.load %arg4[%c0_15, %c1_16, %c0_17, %c0_18] : memref<16x2x16x16xf32, #tpu.memory_space<vmem>>, vector<16x1x16x16xf32>
    %30 = vector.shape_cast %29 : vector<16x1x16x16xf32> to vector<16x16x16xf32>
    %31 = vector.shape_cast %28 : vector<16x16x16xf32> to vector<16x1x16x16xf32>
    tpu.vector_store %arg4[%c0_15, %c1_16, %c0_17, %c0_18], %31 {strides = array<i32>} : memref<16x2x16x16xf32, #tpu.memory_space<vmem>>, vector<16x1x16x16xf32>,
    return
  }
  func.func @transform_0(%arg0: i32) -> (i32, i32) {
    %c0_i32 = arith.constant 0 : i32
    %c0_i32_0 = arith.constant 0 : i32
    return %arg0, %c0_i32 : i32, i32
  }
  func.func @transform_1(%arg0: i32) -> (i32, i32, i32) {
    %c0_i32 = arith.constant 0 : i32
    %c0_i32_0 = arith.constant 0 : i32
    %c0_i32_1 = arith.constant 0 : i32
    %c0_i32_2 = arith.constant 0 : i32
    return %c0_i32, %c0_i32_0, %c0_i32_1 : i32, i32, i32
  }
  func.func @transform_2(%arg0: i32) -> (i32, i32) {
    %c0_i32 = arith.constant 0 : i32
    %c0_i32_0 = arith.constant 0 : i32
    %c0_i32_1 = arith.constant 0 : i32
    return %c0_i32, %c0_i32_0 : i32, i32
  }
  func.func @transform_3(%arg0: i32) -> (i32, i32, i32, i32) {
    %c0_i32 = arith.constant 0 : i32
    %c0_i32_0 = arith.constant 0 : i32
    %c0_i32_1 = arith.constant 0 : i32
    %c0_i32_2 = arith.constant 0 : i32
    return %arg0, %c0_i32, %c0_i32_0, %c0_i32_1 : i32, i32, i32, i32
  }
}

</mosaic_0001>

<llo_original>
// kernel: tpu_custom_call.1
$region0: #{tpu_custom_call.1}
  #allocation0 [shape = 'u32[]', space=smem, size = 0x4, offset = 0x4, fixed_abs, tag = 'smem constant byte address 0x4 - core index']
  #allocation1 [shape = 'u32[72,128]{1,0:T(1,128)}', space=vmem, size = 0x9000, scoped, tag = 'internal scratch']
  %s0 = inlined_call_operand.vmem [shape: f32[512,4], index: 0, kind: input, shape index: {}]
  %s1 = inlined_call_operand.vmem [shape: f32[2,4,16], index: 1, kind: input, shape index: {}]
  %s2 = inlined_call_operand.vmem [shape: f32[1,16], index: 2, kind: input, shape index: {}]
  %s3 = inlined_call_operand.vmem [shape: f32[32,2,16,16], index: 3, kind: output, shape index: {}]
  %s4 = sld [smem:[#allocation0]]
  $region45: #{tpu_custom_call.1} parent=0
    _
  %s6 = ssub.s32 1, %s4
  %s7 = scalar_select 0, %s6, %s4
  loop: start=0, step=1, limit=4
  $region2: #{tpu_custom_call.1} parent=0 // loop_pre_header
    _
  $region3: #{tpu_custom_call.1} parent=0 // loop_header
    %s9 = sphi 0, %s13
    %p10 = scmp.ge.s32.totalorder %s9, 4
    %s19 = sphi 0, %s21
    %s22 = sphi 0, %s19
    %s23 = sphi 0, %s22
    %s39 = sphi 0, %s23
    %s43 = sphi 0, %s43
    %s45 = sphi 0, %s43
    %s46 = sphi 0, %s45
    %s60 = sphi 0, %s46
    %s64 = sphi 0, %s64
    %s66 = sphi 0, %s64
    %s67 = sphi 0, %s66
    %s81 = sphi 0, %s67
    %s87 = sphi 0, %s89
    %s90 = sphi 0, %s87
    %s91 = sphi 0, %s90
    %s107 = sphi 0, %s91
  $region4: #{tpu_custom_call.1} parent=0 // loop_header_branch
    %12 = sbr.rel (%p10) target = $region8
  $region5: #{tpu_custom_call.1} parent=0 // loop_body
    %s14 = ssub.s32 %s9, 1
    %s15 = ssub.s32 %s9, 2
    %s16 = sadd.s32 %s9, 1
    %s17 = ssub.s32 %s9, %s16
    %p18 = scmp.eq.s32.totalorder %s17, 0
    %s20 = sadd.s32 %s19, 1
    %s21 = scalar_select %p18, %s19, %s20
    %p24 = pneg %p18
    %p25 = scmp.eq.s32.totalorder %s9, 1
    %p26 = por %p24, %p25
    %p27 = scmp.ne.s32.totalorder %s19, %s22
    %p28 = scmp.eq.s32.totalorder %s9, 0
    %p29 = por %p27, %p28
    %p30 = scmp.ne.s32.totalorder %s19, %s22
    %p31 = scmp.eq.s32.totalorder %s14, 1
    %p32 = por %p30, %p31
    %p33 = scmp.ne.s32.totalorder %s22, %s23
    %p34 = scmp.eq.s32.totalorder %s14, 0
    %p35 = por %p33, %p34
    %p36 = scmp.ne.s32.totalorder %s22, %s23
    %p37 = scmp.eq.s32.totalorder %s15, 1
    %p38 = por %p36, %p37
    %p40 = scmp.ne.s32.totalorder %s23, %s39
    %p41 = scmp.eq.s32.totalorder %s15, 0
    %p42 = por %p40, %p41
    %s44 = sadd.s32 %s43, 1
    %p47 = scmp.eq.s32.totalorder %s9, 1
    %p48 = scmp.ne.s32.totalorder %s43, %s45
    %p49 = scmp.eq.s32.totalorder %s9, 0
    %p50 = por %p48, %p49
    %p51 = scmp.ne.s32.totalorder %s43, %s45
    %p52 = scmp.eq.s32.totalorder %s14, 1
    %p53 = por %p51, %p52
    %p54 = scmp.ne.s32.totalorder %s45, %s46
    %p55 = scmp.eq.s32.totalorder %s14, 0
    %p56 = por %p54, %p55
    %p57 = scmp.ne.s32.totalorder %s45, %s46
    %p58 = scmp.eq.s32.totalorder %s15, 1
    %p59 = por %p57, %p58
    %p61 = scmp.ne.s32.totalorder %s46, %s60
    %p62 = scmp.eq.s32.totalorder %s15, 0
    %p63 = por %p61, %p62
    %s65 = sadd.s32 %s64, 1
    %p68 = scmp.eq.s32.totalorder %s9, 1
    %p69 = scmp.ne.s32.totalorder %s64, %s66
    %p70 = scmp.eq.s32.totalorder %s9, 0
    %p71 = por %p69, %p70
    %p72 = scmp.ne.s32.totalorder %s64, %s66
    %p73 = scmp.eq.s32.totalorder %s14, 1
    %p74 = por %p72, %p73
    %p75 = scmp.ne.s32.totalorder %s66, %s67
    %p76 = scmp.eq.s32.totalorder %s14, 0
    %p77 = por %p75, %p76
    %p78 = scmp.ne.s32.totalorder %s66, %s67
    %p79 = scmp.eq.s32.totalorder %s15, 1
    %p80 = por %p78, %p79
    %p82 = scmp.ne.s32.totalorder %s67, %s81
    %p83 = scmp.eq.s32.totalorder %s15, 0
    %p84 = por %p82, %p83
    %s85 = ssub.s32 %s9, %s16
    %p86 = scmp.eq.s32.totalorder %s85, 0
    %s88 = sadd.s32 %s87, 1
    %s89 = scalar_select %p86, %s87, %s88
    %p92 = pneg %p86
    %p93 = scmp.eq.s32.totalorder %s9, 1
    %p94 = por %p92, %p93
    %p95 = scmp.ne.s32.totalorder %s87, %s90
    %p96 = scmp.eq.s32.totalorder %s9, 0
    %p97 = por %p95, %p96
    %p98 = scmp.ne.s32.totalorder %s87, %s90
    %p99 = scmp.eq.s32.totalorder %s14, 1
    %p100 = por %p98, %p99
    %p101 = scmp.ne.s32.totalorder %s90, %s91
    %p102 = scmp.eq.s32.totalorder %s14, 0
    %p103 = por %p101, %p102
    %p104 = scmp.ne.s32.totalorder %s90, %s91
    %p105 = scmp.eq.s32.totalorder %s15, 1
    %p106 = por %p104, %p105
    %p108 = scmp.ne.s32.totalorder %s91, %s107
    %p109 = scmp.eq.s32.totalorder %s15, 0
    %p110 = por %p108, %p109
    %p111 = scmp.le.s32.totalorder 1, %s9
    %p112 = scmp.lt.s32.totalorder %s9, 3
    %p113 = pnand %p111, %p112
    %p114 = pneg %p113
    // Predicated region
    $region9: #{tpu_custom_call.1} parent=5 // pred_check
      _
    $region10: #{tpu_custom_call.1} parent=5 // pred_check_branch
      %116 = sbr.rel (%p113) target = $region12
    $region11: #{tpu_custom_call.1} parent=5 // pred_region
      %s117 = ssub.s32 %s9, 1
      // Predicated region
      $region13: #{tpu_custom_call.1} parent=11 // pred_check
        %p118 = pneg %p56
      $region14: #{tpu_custom_call.1} parent=11 // pred_check_branch
        %120 = sbr.rel (%p118) target = $region16
      $region15: #{tpu_custom_call.1} parent=11 // pred_region
        _
      $region16: #{tpu_custom_call.1} parent=11 // pred_fallthru
        _
      // Predicated region
      $region17: #{tpu_custom_call.1} parent=11 // pred_check
        %p121 = pneg %p77
      $region18: #{tpu_custom_call.1} parent=11 // pred_check_branch
        %123 = sbr.rel (%p121) target = $region20
      $region19: #{tpu_custom_call.1} parent=11 // pred_region
        _
      $region20: #{tpu_custom_call.1} parent=11 // pred_fallthru
        _
    $region12: #{tpu_custom_call.1} parent=5 // pred_fallthru
      _
    %p124 = scmp.lt.s32.totalorder %s9, 2
    // Predicated region
    $region21: #{tpu_custom_call.1} parent=5 // pred_check
      %p125 = pneg %p124
    $region22: #{tpu_custom_call.1} parent=5 // pred_check_branch
      %127 = sbr.rel (%p125) target = $region24
    $region23: #{tpu_custom_call.1} parent=5 // pred_region
      // Predicated region
      $region25: #{tpu_custom_call.1} parent=23 // pred_check
        %p128 = pneg %p29
      $region26: #{tpu_custom_call.1} parent=23 // pred_check_branch
        %130 = sbr.rel (%p128) target = $region28
      $region27: #{tpu_custom_call.1} parent=23 // pred_region
        %s131 = smul.u32 32, %s9
        %p132 = scmp.lt.s32.totalorder %s131, 63
        %s133 = scalar_select %p132, %s131, 63
        %s134 = smul.addr %s133, 8
        %s135 = scalar_lea.vmem %s0, %s134
        %s136 = smul.u32 32, %s9
      $region28: #{tpu_custom_call.1} parent=23 // pred_fallthru
        _
    $region24: #{tpu_custom_call.1} parent=5 // pred_fallthru
      _
    %p137 = scmp.le.s32.totalorder 1, %s9
    %p138 = scmp.lt.s32.totalorder %s9, 3
    %p139 = pnand %p137, %p138
    %p140 = pneg %p139
    // Predicated region
    $region29: #{tpu_custom_call.1} parent=5 // pred_check
      _
    $region30: #{tpu_custom_call.1} parent=5 // pred_check_branch
      %142 = sbr.rel (%p139) target = $region32
    $region31: #{tpu_custom_call.1} parent=5 // pred_region
      %s143 = ssub.s32 %s9, 1
      %s144 = smul.u32 32, %s14
      %p145 = scmp.lt.s32.totalorder %s144, 63
      %s146 = scalar_select %p145, %s144, 63
      %s147 = smul.addr %s146, 8
      %s148 = scalar_lea.vmem %s0, %s147
      %p149 = pneg %p35
      %p150 = pneg %p32
      %p151 = pneg %p56
      %p152 = pneg %p53
      %p153 = pneg %p77
      %p154 = pneg %p74
      %p155 = pneg %p103
      %p156 = pneg %p100
      %s157 = smul.u32 16, %s14
      %p158 = scmp.lt.s32.totalorder %s157, 31
      %s159 = scalar_select %p158, %s157, 31
      %s160 = smul.addr %s159, 4
      %s161 = smul.addr %s160, 8
      %s162 = scalar_lea.vmem %s3, %s161
      %s163 = smul.u32 32, %s14
      %p164 = scmp.lt.s32.totalorder %s163, 63
      %s165 = scalar_select %p164, %s163, 63
      %s166 = smul.addr %s165, 8
      %s167 = scalar_lea.vmem %s0, %s166
      %s168 = smul.u32 32, %s14
      %s169 = smul.u32 16, %s14
      %p170 = scmp.lt.s32.totalorder %s169, 31
      %s171 = scalar_select %p170, %s169, 31
      %s172 = smul.addr %s171, 4
      %s173 = smul.addr %s172, 8
      %s174 = scalar_lea.vmem %s3, %s173
      %s175 = smul.u32 16, %s14
      %v176 = vld [vmem:[%s167] sm:$0xff]
      %v177 = vld [vmem:[%s167 + $0x8] sm:$0xff]
      %v178 = vld [vmem:[%s167 + $0x10] sm:$0xff]
      %v179 = vld [vmem:[%s167 + $0x18] sm:$0xff]
      %v180 = vld [vmem:[%s167 + $0x20] sm:$0xff]
      %v181 = vld [vmem:[%s167 + $0x28] sm:$0xff]
      %v182 = vld [vmem:[%s167 + $0x30] sm:$0xff]
      %v183 = vld [vmem:[%s167 + $0x38] sm:$0xff]
      %v184 = vld [vmem:[%s167 + $0x40] sm:$0xff]
      %v185 = vld [vmem:[%s167 + $0x48] sm:$0xff]
      %v186 = vld [vmem:[%s167 + $0x50] sm:$0xff]
      %v187 = vld [vmem:[%s167 + $0x58] sm:$0xff]
      %v188 = vld [vmem:[%s167 + $0x60] sm:$0xff]
      %v189 = vld [vmem:[%s167 + $0x68] sm:$0xff]
      %v190 = vld [vmem:[%s167 + $0x70] sm:$0xff]
      %v191 = vld [vmem:[%s167 + $0x78] sm:$0xff]
      %v192 = vld [vmem:[%s167 + $0x80] sm:$0xff]
      %v193 = vld [vmem:[%s167 + $0x88] sm:$0xff]
      %v194 = vld [vmem:[%s167 + $0x90] sm:$0xff]
      %v195 = vld [vmem:[%s167 + $0x98] sm:$0xff]
      %v196 = vld [vmem:[%s167 + $0xa0] sm:$0xff]
      %v197 = vld [vmem:[%s167 + $0xa8] sm:$0xff]
      %v198 = vld [vmem:[%s167 + $0xb0] sm:$0xff]
      %v199 = vld [vmem:[%s167 + $0xb8] sm:$0xff]
      %v200 = vld [vmem:[%s167 + $0xc0] sm:$0xff]
      %v201 = vld [vmem:[%s167 + $0xc8] sm:$0xff]
      %v202 = vld [vmem:[%s167 + $0xd0] sm:$0xff]
      %v203 = vld [vmem:[%s167 + $0xd8] sm:$0xff]
      %v204 = vld [vmem:[%s167 + $0xe0] sm:$0xff]
      %v205 = vld [vmem:[%s167 + $0xe8] sm:$0xff]
      %v206 = vld [vmem:[%s167 + $0xf0] sm:$0xff]
      %v207 = vld [vmem:[%s167 + $0xf8] sm:$0xff]
      %v208 = vld [vmem:[%s2] sm:$0x1]
      %v209 = vld [vmem:[%s1] sm:$0xf]
      %v211 = vperm.slane %v208, 0
      %vm213 = vcmask 31744
      %v215 = vsel %vm213, %v176, 0
      %v218 = vsel %vm213, %v177, 0
      %v221 = vsel %vm213, %v178, 0
      %v224 = vsel %vm213, %v179, 0
      %v227 = vsel %vm213, %v180, 0
      %v230 = vsel %vm213, %v181, 0
      %v233 = vsel %vm213, %v182, 0
      %v236 = vsel %vm213, %v183, 0
      %v239 = vsel %vm213, %v184, 0
      %v242 = vsel %vm213, %v185, 0
      %v245 = vsel %vm213, %v186, 0
      %v248 = vsel %vm213, %v187, 0
      %v251 = vsel %vm213, %v188, 0
      %v254 = vsel %vm213, %v189, 0
      %v257 = vsel %vm213, %v190, 0
      %v260 = vsel %vm213, %v191, 0
      %v263 = vsel %vm213, %v192, 0
      %v266 = vsel %vm213, %v193, 0
      %v269 = vsel %vm213, %v194, 0
      %v272 = vsel %vm213, %v195, 0
      %v275 = vsel %vm213, %v196, 0
      %v278 = vsel %vm213, %v197, 0
      %v281 = vsel %vm213, %v198, 0
      %v284 = vsel %vm213, %v199, 0
      %v287 = vsel %vm213, %v200, 0
      %v290 = vsel %vm213, %v201, 0
      %v293 = vsel %vm213, %v202, 0
      %v296 = vsel %vm213, %v203, 0
      %v299 = vsel %vm213, %v204, 0
      %v302 = vsel %vm213, %v205, 0
      %v305 = vsel %vm213, %v206, 0
      %v308 = vsel %vm213, %v207, 0
      %vm310 = vcmask 1043456
      %v312 = vsel %vm310, %v209, 0
      %314 = vmatpush.msra.mxu0 0.0
      %315 = vmatpush.msra.mxu0 0.0
      %316 = vmatpush.msra.mxu0 0.0
      %317 = vmatpush.msra.mxu0 0.0
      %318 = vmatpush.msra.mxu0 0.0
      %319 = vmatpush.msra.mxu0 0.0
      %320 = vmatpush.msra.mxu0 0.0
      %321 = vmatpush.msra.mxu0 0.0
      %322 = vmatpush.msra.mxu0 0.0
      %323 = vmatpush.msra.mxu0 0.0
      %324 = vmatpush.msra.mxu0 0.0
      %325 = vmatpush.msra.mxu0 0.0
      %326 = vmatpush.msra.mxu0 0.0
      %327 = vmatpush.msra.mxu0 0.0
      %328 = vmatpush.msra.mxu0 0.0
      %329 = vmatpush.msra.mxu0 %v312
      %330 = vmatmul.f32.gmra.mxu0 %v215
      %v331 = vpop.f32.mrf.mxu0
      %v332 = vadd.f32 %v211, %v331
      %333 = vmatmul.f32.gmra.mxu0 %v218
      %v334 = vpop.f32.mrf.mxu0
      %v335 = vadd.f32 %v211, %v334
      %336 = vmatmul.f32.gmra.mxu0 %v221
      %v337 = vpop.f32.mrf.mxu0
      %v338 = vadd.f32 %v211, %v337
      %339 = vmatmul.f32.gmra.mxu0 %v224
      %v340 = vpop.f32.mrf.mxu0
      %v341 = vadd.f32 %v211, %v340
      %342 = vmatmul.f32.gmra.mxu0 %v227
      %v343 = vpop.f32.mrf.mxu0
      %v344 = vadd.f32 %v211, %v343
      %345 = vmatmul.f32.gmra.mxu0 %v230
      %v346 = vpop.f32.mrf.mxu0
      %v347 = vadd.f32 %v211, %v346
      %348 = vmatmul.f32.gmra.mxu0 %v233
      %v349 = vpop.f32.mrf.mxu0
      %v350 = vadd.f32 %v211, %v349
      %351 = vmatmul.f32.gmra.mxu0 %v236
      %v352 = vpop.f32.mrf.mxu0
      %v353 = vadd.f32 %v211, %v352
      %354 = vmatmul.f32.gmra.mxu0 %v239
      %v355 = vpop.f32.mrf.mxu0
      %v356 = vadd.f32 %v211, %v355
      %357 = vmatmul.f32.gmra.mxu0 %v242
      %v358 = vpop.f32.mrf.mxu0
      %v359 = vadd.f32 %v211, %v358
      %360 = vmatmul.f32.gmra.mxu0 %v245
      %v361 = vpop.f32.mrf.mxu0
      %v362 = vadd.f32 %v211, %v361
      %363 = vmatmul.f32.gmra.mxu0 %v248
      %v364 = vpop.f32.mrf.mxu0
      %v365 = vadd.f32 %v211, %v364
      %366 = vmatmul.f32.gmra.mxu0 %v251
      %v367 = vpop.f32.mrf.mxu0
      %v368 = vadd.f32 %v211, %v367
      %369 = vmatmul.f32.gmra.mxu0 %v254
      %v370 = vpop.f32.mrf.mxu0
      %v371 = vadd.f32 %v211, %v370
      %372 = vmatmul.f32.gmra.mxu0 %v257
      %v373 = vpop.f32.mrf.mxu0
      %v374 = vadd.f32 %v211, %v373
      %375 = vmatmul.f32.gmra.mxu0 %v260
      %v376 = vpop.f32.mrf.mxu0
      %v377 = vadd.f32 %v211, %v376
      %378 = vmatmul.f32.gmra.mxu0 %v263
      %v379 = vpop.f32.mrf.mxu0
      %v380 = vadd.f32 %v211, %v379
      %381 = vmatmul.f32.gmra.mxu0 %v266
      %v382 = vpop.f32.mrf.mxu0
      %v383 = vadd.f32 %v211, %v382
      %384 = vmatmul.f32.gmra.mxu0 %v269
      %v385 = vpop.f32.mrf.mxu0
      %v386 = vadd.f32 %v211, %v385
      %387 = vmatmul.f32.gmra.mxu0 %v272
      %v388 = vpop.f32.mrf.mxu0
      %v389 = vadd.f32 %v211, %v388
      %390 = vmatmul.f32.gmra.mxu0 %v275
      %v391 = vpop.f32.mrf.mxu0
      %v392 = vadd.f32 %v211, %v391
      %393 = vmatmul.f32.gmra.mxu0 %v278
      %v394 = vpop.f32.mrf.mxu0
      %v395 = vadd.f32 %v211, %v394
      %396 = vmatmul.f32.gmra.mxu0 %v281
      %v397 = vpop.f32.mrf.mxu0
      %v398 = vadd.f32 %v211, %v397
      %399 = vmatmul.f32.gmra.mxu0 %v284
      %v400 = vpop.f32.mrf.mxu0
      %v401 = vadd.f32 %v211, %v400
      %402 = vmatmul.f32.gmra.mxu0 %v287
      %v403 = vpop.f32.mrf.mxu0
      %v404 = vadd.f32 %v211, %v403
      %405 = vmatmul.f32.gmra.mxu0 %v290
      %v406 = vpop.f32.mrf.mxu0
      %v407 = vadd.f32 %v211, %v406
      %408 = vmatmul.f32.gmra.mxu0 %v293
      %v409 = vpop.f32.mrf.mxu0
      %v410 = vadd.f32 %v211, %v409
      %411 = vmatmul.f32.gmra.mxu0 %v296
      %v412 = vpop.f32.mrf.mxu0
      %v413 = vadd.f32 %v211, %v412
      %414 = vmatmul.f32.gmra.mxu0 %v299
      %v415 = vpop.f32.mrf.mxu0
      %v416 = vadd.f32 %v211, %v415
      %417 = vmatmul.f32.gmra.mxu0 %v302
      %v418 = vpop.f32.mrf.mxu0
      %v419 = vadd.f32 %v211, %v418
      %420 = vmatmul.f32.gmra.mxu0 %v305
      %v421 = vpop.f32.mrf.mxu0
      %v422 = vadd.f32 %v211, %v421
      %423 = vmatmul.f32.gmra.mxu0 %v308
      %v424 = vpop.f32.mrf.mxu0
      %v425 = vadd.f32 %v211, %v424
      %426 = vdwg.mxu0
      %v427 = vxor.u32 %v332, 2147483648
      %v428 = vxor.u32 %v335, 2147483648
      %v429 = vxor.u32 %v338, 2147483648
      %v430 = vxor.u32 %v341, 2147483648
      %v431 = vxor.u32 %v344, 2147483648
      %v432 = vxor.u32 %v347, 2147483648
      %v433 = vxor.u32 %v350, 2147483648
      %v434 = vxor.u32 %v353, 2147483648
      %v435 = vxor.u32 %v356, 2147483648
      %v436 = vxor.u32 %v359, 2147483648
      %v437 = vxor.u32 %v362, 2147483648
      %v438 = vxor.u32 %v365, 2147483648
      %v439 = vxor.u32 %v368, 2147483648
      %v440 = vxor.u32 %v371, 2147483648
      %v441 = vxor.u32 %v374, 2147483648
      %v442 = vxor.u32 %v377, 2147483648
      %v443 = vxor.u32 %v380, 2147483648
      %v444 = vxor.u32 %v383, 2147483648
      %v445 = vxor.u32 %v386, 2147483648
      %v446 = vxor.u32 %v389, 2147483648
      %v447 = vxor.u32 %v392, 2147483648
      %v448 = vxor.u32 %v395, 2147483648
      %v449 = vxor.u32 %v398, 2147483648
      %v450 = vxor.u32 %v401, 2147483648
      %v451 = vxor.u32 %v404, 2147483648
      %v452 = vxor.u32 %v407, 2147483648
      %v453 = vxor.u32 %v410, 2147483648
      %v454 = vxor.u32 %v413, 2147483648
      %v455 = vxor.u32 %v416, 2147483648
      %v456 = vxor.u32 %v419, 2147483648
      %v457 = vxor.u32 %v422, 2147483648
      %v458 = vxor.u32 %v425, 2147483648
      %v459 = vmul.f32 %v427, 1.442695
      %v460 = vpow.pop %v459
      %v461 = vmul.f32 %v428, 1.442695
      %v462 = vpow.pop %v461
      %v463 = vmul.f32 %v429, 1.442695
      %v464 = vpow.pop %v463
      %v465 = vmul.f32 %v430, 1.442695
      %v466 = vpow.pop %v465
      %v467 = vmul.f32 %v431, 1.442695
      %v468 = vpow.pop %v467
      %v469 = vmul.f32 %v432, 1.442695
      %v470 = vpow.pop %v469
      %v471 = vmul.f32 %v433, 1.442695
      %v472 = vpow.pop %v471
      %v473 = vmul.f32 %v434, 1.442695
      %v474 = vpow.pop %v473
      %v475 = vmul.f32 %v435, 1.442695
      %v476 = vpow.pop %v475
      %v477 = vmul.f32 %v436, 1.442695
      %v478 = vpow.pop %v477
      %v479 = vmul.f32 %v437, 1.442695
      %v480 = vpow.pop %v479
      %v481 = vmul.f32 %v438, 1.442695
      %v482 = vpow.pop %v481
      %v483 = vmul.f32 %v439, 1.442695
      %v484 = vpow.pop %v483
      %v485 = vmul.f32 %v440, 1.442695
      %v486 = vpow.pop %v485
      %v487 = vmul.f32 %v441, 1.442695
      %v488 = vpow.pop %v487
      %v489 = vmul.f32 %v442, 1.442695
      %v490 = vpow.pop %v489
      %v491 = vmul.f32 %v443, 1.442695
      %v492 = vpow.pop %v491
      %v493 = vmul.f32 %v444, 1.442695
      %v494 = vpow.pop %v493
      %v495 = vmul.f32 %v445, 1.442695
      %v496 = vpow.pop %v495
      %v497 = vmul.f32 %v446, 1.442695
      %v498 = vpow.pop %v497
      %v499 = vmul.f32 %v447, 1.442695
      %v500 = vpow.pop %v499
      %v501 = vmul.f32 %v448, 1.442695
      %v502 = vpow.pop %v501
      %v503 = vmul.f32 %v449, 1.442695
      %v504 = vpow.pop %v503
      %v505 = vmul.f32 %v450, 1.442695
      %v506 = vpow.pop %v505
      %v507 = vmul.f32 %v451, 1.442695
      %v508 = vpow.pop %v507
      %v509 = vmul.f32 %v452, 1.442695
      %v510 = vpow.pop %v509
      %v511 = vmul.f32 %v453, 1.442695
      %v512 = vpow.pop %v511
      %v513 = vmul.f32 %v454, 1.442695
      %v514 = vpow.pop %v513
      %v515 = vmul.f32 %v455, 1.442695
      %v516 = vpow.pop %v515
      %v517 = vmul.f32 %v456, 1.442695
      %v518 = vpow.pop %v517
      %v519 = vmul.f32 %v457, 1.442695
      %v520 = vpow.pop %v519
      %v521 = vmul.f32 %v458, 1.442695
      %v522 = vpow.pop %v521
      %v523 = vadd.f32 %v460, 1.0
      %v524 = vadd.f32 %v462, 1.0
      %v525 = vadd.f32 %v464, 1.0
      %v526 = vadd.f32 %v466, 1.0
      %v527 = vadd.f32 %v468, 1.0
      %v528 = vadd.f32 %v470, 1.0
      %v529 = vadd.f32 %v472, 1.0
      %v530 = vadd.f32 %v474, 1.0
      %v531 = vadd.f32 %v476, 1.0
      %v532 = vadd.f32 %v478, 1.0
      %v533 = vadd.f32 %v480, 1.0
      %v534 = vadd.f32 %v482, 1.0
      %v535 = vadd.f32 %v484, 1.0
      %v536 = vadd.f32 %v486, 1.0
      %v537 = vadd.f32 %v488, 1.0
      %v538 = vadd.f32 %v490, 1.0
      %v539 = vadd.f32 %v492, 1.0
      %v540 = vadd.f32 %v494, 1.0
      %v541 = vadd.f32 %v496, 1.0
      %v542 = vadd.f32 %v498, 1.0
      %v543 = vadd.f32 %v500, 1.0
      %v544 = vadd.f32 %v502, 1.0
      %v545 = vadd.f32 %v504, 1.0
      %v546 = vadd.f32 %v506, 1.0
      %v547 = vadd.f32 %v508, 1.0
      %v548 = vadd.f32 %v510, 1.0
      %v549 = vadd.f32 %v512, 1.0
      %v550 = vadd.f32 %v514, 1.0
      %v551 = vadd.f32 %v516, 1.0
      %v552 = vadd.f32 %v518, 1.0
      %v553 = vadd.f32 %v520, 1.0
      %v554 = vadd.f32 %v522, 1.0
      %v555 = vrcp.pop %v523
      %v556 = vmul.f32 %v523, %v555
      %v557 = vsub.f32 1.0, %v556
      %v558 = vmul.f32 %v555, %v557
      %v559 = vadd.f32 %v555, %v558
      %vm560 = vweird.f32 %v523
      %vm561 = vweird.f32 %v555
      %vm562 = vmor %vm560, %vm561
      %v563 = vsel %vm562, %v555, %v559
      %v564 = vand.u32 2147483647, %v523
      %vm565 = vcmp.eq.f32.partialorder %v564, 8.507059e+37
      %v566 = vand.u32 %v523, 2147483648
      %v567 = vor.u32 1.1754944e-38, %v566
      %v568 = vsel %vm565, %v567, %v563
      %v569 = vmul.f32 1.0, %v568
      %v570 = vrcp.pop %v524
      %v571 = vmul.f32 %v524, %v570
      %v572 = vsub.f32 1.0, %v571
      %v573 = vmul.f32 %v570, %v572
      %v574 = vadd.f32 %v570, %v573
      %vm575 = vweird.f32 %v524
      %vm576 = vweird.f32 %v570
      %vm577 = vmor %vm575, %vm576
      %v578 = vsel %vm577, %v570, %v574
      %v579 = vand.u32 2147483647, %v524
      %vm580 = vcmp.eq.f32.partialorder %v579, 8.507059e+37
      %v581 = vand.u32 %v524, 2147483648
      %v582 = vor.u32 1.1754944e-38, %v581
      %v583 = vsel %vm580, %v582, %v578
      %v584 = vmul.f32 1.0, %v583
      %v585 = vrcp.pop %v525
      %v586 = vmul.f32 %v525, %v585
      %v587 = vsub.f32 1.0, %v586
      %v588 = vmul.f32 %v585, %v587
      %v589 = vadd.f32 %v585, %v588
      %vm590 = vweird.f32 %v525
      %vm591 = vweird.f32 %v585
      %vm592 = vmor %vm590, %vm591
      %v593 = vsel %vm592, %v585, %v589
      %v594 = vand.u32 2147483647, %v525
      %vm595 = vcmp.eq.f32.partialorder %v594, 8.507059e+37
      %v596 = vand.u32 %v525, 2147483648
      %v597 = vor.u32 1.1754944e-38, %v596
      %v598 = vsel %vm595, %v597, %v593
      %v599 = vmul.f32 1.0, %v598
      %v600 = vrcp.pop %v526
      %v601 = vmul.f32 %v526, %v600
      %v602 = vsub.f32 1.0, %v601
      %v603 = vmul.f32 %v600, %v602
      %v604 = vadd.f32 %v600, %v603
      %vm605 = vweird.f32 %v526
      %vm606 = vweird.f32 %v600
      %vm607 = vmor %vm605, %vm606
      %v608 = vsel %vm607, %v600, %v604
      %v609 = vand.u32 2147483647, %v526
      %vm610 = vcmp.eq.f32.partialorder %v609, 8.507059e+37
      %v611 = vand.u32 %v526, 2147483648
      %v612 = vor.u32 1.1754944e-38, %v611
      %v613 = vsel %vm610, %v612, %v608
      %v614 = vmul.f32 1.0, %v613
      %v615 = vrcp.pop %v527
      %v616 = vmul.f32 %v527, %v615
      %v617 = vsub.f32 1.0, %v616
      %v618 = vmul.f32 %v615, %v617
      %v619 = vadd.f32 %v615, %v618
      %vm620 = vweird.f32 %v527
      %vm621 = vweird.f32 %v615
      %vm622 = vmor %vm620, %vm621
      %v623 = vsel %vm622, %v615, %v619
      %v624 = vand.u32 2147483647, %v527
      %vm625 = vcmp.eq.f32.partialorder %v624, 8.507059e+37
      %v626 = vand.u32 %v527, 2147483648
      %v627 = vor.u32 1.1754944e-38, %v626
      %v628 = vsel %vm625, %v627, %v623
      %v629 = vmul.f32 1.0, %v628
      %v630 = vrcp.pop %v528
      %v631 = vmul.f32 %v528, %v630
      %v632 = vsub.f32 1.0, %v631
      %v633 = vmul.f32 %v630, %v632
      %v634 = vadd.f32 %v630, %v633
      %vm635 = vweird.f32 %v528
      %vm636 = vweird.f32 %v630
      %vm637 = vmor %vm635, %vm636
      %v638 = vsel %vm637, %v630, %v634
      %v639 = vand.u32 2147483647, %v528
      %vm640 = vcmp.eq.f32.partialorder %v639, 8.507059e+37
      %v641 = vand.u32 %v528, 2147483648
      %v642 = vor.u32 1.1754944e-38, %v641
      %v643 = vsel %vm640, %v642, %v638
      %v644 = vmul.f32 1.0, %v643
      %v645 = vrcp.pop %v529
      %v646 = vmul.f32 %v529, %v645
      %v647 = vsub.f32 1.0, %v646
      %v648 = vmul.f32 %v645, %v647
      %v649 = vadd.f32 %v645, %v648
      %vm650 = vweird.f32 %v529
      %vm651 = vweird.f32 %v645
      %vm652 = vmor %vm650, %vm651
      %v653 = vsel %vm652, %v645, %v649
      %v654 = vand.u32 2147483647, %v529
      %vm655 = vcmp.eq.f32.partialorder %v654, 8.507059e+37
      %v656 = vand.u32 %v529, 2147483648
      %v657 = vor.u32 1.1754944e-38, %v656
      %v658 = vsel %vm655, %v657, %v653
      %v659 = vmul.f32 1.0, %v658
      %v660 = vrcp.pop %v530
      %v661 = vmul.f32 %v530, %v660
      %v662 = vsub.f32 1.0, %v661
      %v663 = vmul.f32 %v660, %v662
      %v664 = vadd.f32 %v660, %v663
      %vm665 = vweird.f32 %v530
      %vm666 = vweird.f32 %v660
      %vm667 = vmor %vm665, %vm666
      %v668 = vsel %vm667, %v660, %v664
      %v669 = vand.u32 2147483647, %v530
      %vm670 = vcmp.eq.f32.partialorder %v669, 8.507059e+37
      %v671 = vand.u32 %v530, 2147483648
      %v672 = vor.u32 1.1754944e-38, %v671
      %v673 = vsel %vm670, %v672, %v668
      %v674 = vmul.f32 1.0, %v673
      %v675 = vrcp.pop %v531
      %v676 = vmul.f32 %v531, %v675
      %v677 = vsub.f32 1.0, %v676
      %v678 = vmul.f32 %v675, %v677
      %v679 = vadd.f32 %v675, %v678
      %vm680 = vweird.f32 %v531
      %vm681 = vweird.f32 %v675
      %vm682 = vmor %vm680, %vm681
      %v683 = vsel %vm682, %v675, %v679
      %v684 = vand.u32 2147483647, %v531
      %vm685 = vcmp.eq.f32.partialorder %v684, 8.507059e+37
      %v686 = vand.u32 %v531, 2147483648
      %v687 = vor.u32 1.1754944e-38, %v686
      %v688 = vsel %vm685, %v687, %v683
      %v689 = vmul.f32 1.0, %v688
      %v690 = vrcp.pop %v532
      %v691 = vmul.f32 %v532, %v690
      %v692 = vsub.f32 1.0, %v691
      %v693 = vmul.f32 %v690, %v692
      %v694 = vadd.f32 %v690, %v693
      %vm695 = vweird.f32 %v532
      %vm696 = vweird.f32 %v690
      %vm697 = vmor %vm695, %vm696
      %v698 = vsel %vm697, %v690, %v694
      %v699 = vand.u32 2147483647, %v532
      %vm700 = vcmp.eq.f32.partialorder %v699, 8.507059e+37
      %v701 = vand.u32 %v532, 2147483648
      %v702 = vor.u32 1.1754944e-38, %v701
      %v703 = vsel %vm700, %v702, %v698
      %v704 = vmul.f32 1.0, %v703
      %v705 = vrcp.pop %v533
      %v706 = vmul.f32 %v533, %v705
      %v707 = vsub.f32 1.0, %v706
      %v708 = vmul.f32 %v705, %v707
      %v709 = vadd.f32 %v705, %v708
      %vm710 = vweird.f32 %v533
      %vm711 = vweird.f32 %v705
      %vm712 = vmor %vm710, %vm711
      %v713 = vsel %vm712, %v705, %v709
      %v714 = vand.u32 2147483647, %v533
      %vm715 = vcmp.eq.f32.partialorder %v714, 8.507059e+37
      %v716 = vand.u32 %v533, 2147483648
      %v717 = vor.u32 1.1754944e-38, %v716
      %v718 = vsel %vm715, %v717, %v713
      %v719 = vmul.f32 1.0, %v718
      %v720 = vrcp.pop %v534
      %v721 = vmul.f32 %v534, %v720
      %v722 = vsub.f32 1.0, %v721
      %v723 = vmul.f32 %v720, %v722
      %v724 = vadd.f32 %v720, %v723
      %vm725 = vweird.f32 %v534
      %vm726 = vweird.f32 %v720
      %vm727 = vmor %vm725, %vm726
      %v728 = vsel %vm727, %v720, %v724
      %v729 = vand.u32 2147483647, %v534
      %vm730 = vcmp.eq.f32.partialorder %v729, 8.507059e+37
      %v731 = vand.u32 %v534, 2147483648
      %v732 = vor.u32 1.1754944e-38, %v731
      %v733 = vsel %vm730, %v732, %v728
      %v734 = vmul.f32 1.0, %v733
      %v735 = vrcp.pop %v535
      %v736 = vmul.f32 %v535, %v735
      %v737 = vsub.f32 1.0, %v736
      %v738 = vmul.f32 %v735, %v737
      %v739 = vadd.f32 %v735, %v738
      %vm740 = vweird.f32 %v535
      %vm741 = vweird.f32 %v735
      %vm742 = vmor %vm740, %vm741
      %v743 = vsel %vm742, %v735, %v739
      %v744 = vand.u32 2147483647, %v535
      %vm745 = vcmp.eq.f32.partialorder %v744, 8.507059e+37
      %v746 = vand.u32 %v535, 2147483648
      %v747 = vor.u32 1.1754944e-38, %v746
      %v748 = vsel %vm745, %v747, %v743
      %v749 = vmul.f32 1.0, %v748
      %v750 = vrcp.pop %v536
      %v751 = vmul.f32 %v536, %v750
      %v752 = vsub.f32 1.0, %v751
      %v753 = vmul.f32 %v750, %v752
      %v754 = vadd.f32 %v750, %v753
      %vm755 = vweird.f32 %v536
      %vm756 = vweird.f32 %v750
      %vm757 = vmor %vm755, %vm756
      %v758 = vsel %vm757, %v750, %v754
      %v759 = vand.u32 2147483647, %v536
      %vm760 = vcmp.eq.f32.partialorder %v759, 8.507059e+37
      %v761 = vand.u32 %v536, 2147483648
      %v762 = vor.u32 1.1754944e-38, %v761
      %v763 = vsel %vm760, %v762, %v758
      %v764 = vmul.f32 1.0, %v763
      %v765 = vrcp.pop %v537
      %v766 = vmul.f32 %v537, %v765
      %v767 = vsub.f32 1.0, %v766
      %v768 = vmul.f32 %v765, %v767
      %v769 = vadd.f32 %v765, %v768
      %vm770 = vweird.f32 %v537
      %vm771 = vweird.f32 %v765
      %vm772 = vmor %vm770, %vm771
      %v773 = vsel %vm772, %v765, %v769
      %v774 = vand.u32 2147483647, %v537
      %vm775 = vcmp.eq.f32.partialorder %v774, 8.507059e+37
      %v776 = vand.u32 %v537, 2147483648
      %v777 = vor.u32 1.1754944e-38, %v776
      %v778 = vsel %vm775, %v777, %v773
      %v779 = vmul.f32 1.0, %v778
      %v780 = vrcp.pop %v538
      %v781 = vmul.f32 %v538, %v780
      %v782 = vsub.f32 1.0, %v781
      %v783 = vmul.f32 %v780, %v782
      %v784 = vadd.f32 %v780, %v783
      %vm785 = vweird.f32 %v538
      %vm786 = vweird.f32 %v780
      %vm787 = vmor %vm785, %vm786
      %v788 = vsel %vm787, %v780, %v784
      %v789 = vand.u32 2147483647, %v538
      %vm790 = vcmp.eq.f32.partialorder %v789, 8.507059e+37
      %v791 = vand.u32 %v538, 2147483648
      %v792 = vor.u32 1.1754944e-38, %v791
      %v793 = vsel %vm790, %v792, %v788
      %v794 = vmul.f32 1.0, %v793
      %v795 = vrcp.pop %v539
      %v796 = vmul.f32 %v539, %v795
      %v797 = vsub.f32 1.0, %v796
      %v798 = vmul.f32 %v795, %v797
      %v799 = vadd.f32 %v795, %v798
      %vm800 = vweird.f32 %v539
      %vm801 = vweird.f32 %v795
      %vm802 = vmor %vm800, %vm801
      %v803 = vsel %vm802, %v795, %v799
      %v804 = vand.u32 2147483647, %v539
      %vm805 = vcmp.eq.f32.partialorder %v804, 8.507059e+37
      %v806 = vand.u32 %v539, 2147483648
      %v807 = vor.u32 1.1754944e-38, %v806
      %v808 = vsel %vm805, %v807, %v803
      %v809 = vmul.f32 1.0, %v808
      %v810 = vrcp.pop %v540
      %v811 = vmul.f32 %v540, %v810
      %v812 = vsub.f32 1.0, %v811
      %v813 = vmul.f32 %v810, %v812
      %v814 = vadd.f32 %v810, %v813
      %vm815 = vweird.f32 %v540
      %vm816 = vweird.f32 %v810
      %vm817 = vmor %vm815, %vm816
      %v818 = vsel %vm817, %v810, %v814
      %v819 = vand.u32 2147483647, %v540
      %vm820 = vcmp.eq.f32.partialorder %v819, 8.507059e+37
      %v821 = vand.u32 %v540, 2147483648
      %v822 = vor.u32 1.1754944e-38, %v821
      %v823 = vsel %vm820, %v822, %v818
      %v824 = vmul.f32 1.0, %v823
      %v825 = vrcp.pop %v541
      %v826 = vmul.f32 %v541, %v825
      %v827 = vsub.f32 1.0, %v826
      %v828 = vmul.f32 %v825, %v827
      %v829 = vadd.f32 %v825, %v828
      %vm830 = vweird.f32 %v541
      %vm831 = vweird.f32 %v825
      %vm832 = vmor %vm830, %vm831
      %v833 = vsel %vm832, %v825, %v829
      %v834 = vand.u32 2147483647, %v541
      %vm835 = vcmp.eq.f32.partialorder %v834, 8.507059e+37
      %v836 = vand.u32 %v541, 2147483648
      %v837 = vor.u32 1.1754944e-38, %v836
      %v838 = vsel %vm835, %v837, %v833
      %v839 = vmul.f32 1.0, %v838
      %v840 = vrcp.pop %v542
      %v841 = vmul.f32 %v542, %v840
      %v842 = vsub.f32 1.0, %v841
      %v843 = vmul.f32 %v840, %v842
      %v844 = vadd.f32 %v840, %v843
      %vm845 = vweird.f32 %v542
      %vm846 = vweird.f32 %v840
      %vm847 = vmor %vm845, %vm846
      %v848 = vsel %vm847, %v840, %v844
      %v849 = vand.u32 2147483647, %v542
      %vm850 = vcmp.eq.f32.partialorder %v849, 8.507059e+37
      %v851 = vand.u32 %v542, 2147483648
      %v852 = vor.u32 1.1754944e-38, %v851
      %v853 = vsel %vm850, %v852, %v848
      %v854 = vmul.f32 1.0, %v853
      %v855 = vrcp.pop %v543
      %v856 = vmul.f32 %v543, %v855
      %v857 = vsub.f32 1.0, %v856
      %v858 = vmul.f32 %v855, %v857
      %v859 = vadd.f32 %v855, %v858
      %vm860 = vweird.f32 %v543
      %vm861 = vweird.f32 %v855
      %vm862 = vmor %vm860, %vm861
      %v863 = vsel %vm862, %v855, %v859
      %v864 = vand.u32 2147483647, %v543
      %vm865 = vcmp.eq.f32.partialorder %v864, 8.507059e+37
      %v866 = vand.u32 %v543, 2147483648
      %v867 = vor.u32 1.1754944e-38, %v866
      %v868 = vsel %vm865, %v867, %v863
      %v869 = vmul.f32 1.0, %v868
      %v870 = vrcp.pop %v544
      %v871 = vmul.f32 %v544, %v870
      %v872 = vsub.f32 1.0, %v871
      %v873 = vmul.f32 %v870, %v872
      %v874 = vadd.f32 %v870, %v873
      %vm875 = vweird.f32 %v544
      %vm876 = vweird.f32 %v870
      %vm877 = vmor %vm875, %vm876
      %v878 = vsel %vm877, %v870, %v874
      %v879 = vand.u32 2147483647, %v544
      %vm880 = vcmp.eq.f32.partialorder %v879, 8.507059e+37
      %v881 = vand.u32 %v544, 2147483648
      %v882 = vor.u32 1.1754944e-38, %v881
      %v883 = vsel %vm880, %v882, %v878
      %v884 = vmul.f32 1.0, %v883
      %v885 = vrcp.pop %v545
      %v886 = vmul.f32 %v545, %v885
      %v887 = vsub.f32 1.0, %v886
      %v888 = vmul.f32 %v885, %v887
      %v889 = vadd.f32 %v885, %v888
      %vm890 = vweird.f32 %v545
      %vm891 = vweird.f32 %v885
      %vm892 = vmor %vm890, %vm891
      %v893 = vsel %vm892, %v885, %v889
      %v894 = vand.u32 2147483647, %v545
      %vm895 = vcmp.eq.f32.partialorder %v894, 8.507059e+37
      %v896 = vand.u32 %v545, 2147483648
      %v897 = vor.u32 1.1754944e-38, %v896
      %v898 = vsel %vm895, %v897, %v893
      %v899 = vmul.f32 1.0, %v898
      %v900 = vrcp.pop %v546
      %v901 = vmul.f32 %v546, %v900
      %v902 = vsub.f32 1.0, %v901
      %v903 = vmul.f32 %v900, %v902
      %v904 = vadd.f32 %v900, %v903
      %vm905 = vweird.f32 %v546
      %vm906 = vweird.f32 %v900
      %vm907 = vmor %vm905, %vm906
      %v908 = vsel %vm907, %v900, %v904
      %v909 = vand.u32 2147483647, %v546
      %vm910 = vcmp.eq.f32.partialorder %v909, 8.507059e+37
      %v911 = vand.u32 %v546, 2147483648
      %v912 = vor.u32 1.1754944e-38, %v911
      %v913 = vsel %vm910, %v912, %v908
      %v914 = vmul.f32 1.0, %v913
      %v915 = vrcp.pop %v547
      %v916 = vmul.f32 %v547, %v915
      %v917 = vsub.f32 1.0, %v916
      %v918 = vmul.f32 %v915, %v917
      %v919 = vadd.f32 %v915, %v918
      %vm920 = vweird.f32 %v547
      %vm921 = vweird.f32 %v915
      %vm922 = vmor %vm920, %vm921
      %v923 = vsel %vm922, %v915, %v919
      %v924 = vand.u32 2147483647, %v547
      %vm925 = vcmp.eq.f32.partialorder %v924, 8.507059e+37
      %v926 = vand.u32 %v547, 2147483648
      %v927 = vor.u32 1.1754944e-38, %v926
      %v928 = vsel %vm925, %v927, %v923
      %v929 = vmul.f32 1.0, %v928
      %v930 = vrcp.pop %v548
      %v931 = vmul.f32 %v548, %v930
      %v932 = vsub.f32 1.0, %v931
      %v933 = vmul.f32 %v930, %v932
      %v934 = vadd.f32 %v930, %v933
      %vm935 = vweird.f32 %v548
      %vm936 = vweird.f32 %v930
      %vm937 = vmor %vm935, %vm936
      %v938 = vsel %vm937, %v930, %v934
      %v939 = vand.u32 2147483647, %v548
      %vm940 = vcmp.eq.f32.partialorder %v939, 8.507059e+37
      %v941 = vand.u32 %v548, 2147483648
      %v942 = vor.u32 1.1754944e-38, %v941
      %v943 = vsel %vm940, %v942, %v938
      %v944 = vmul.f32 1.0, %v943
      %v945 = vrcp.pop %v549
      %v946 = vmul.f32 %v549, %v945
      %v947 = vsub.f32 1.0, %v946
      %v948 = vmul.f32 %v945, %v947
      %v949 = vadd.f32 %v945, %v948
      %vm950 = vweird.f32 %v549
      %vm951 = vweird.f32 %v945
      %vm952 = vmor %vm950, %vm951
      %v953 = vsel %vm952, %v945, %v949
      %v954 = vand.u32 2147483647, %v549
      %vm955 = vcmp.eq.f32.partialorder %v954, 8.507059e+37
      %v956 = vand.u32 %v549, 2147483648
      %v957 = vor.u32 1.1754944e-38, %v956
      %v958 = vsel %vm955, %v957, %v953
      %v959 = vmul.f32 1.0, %v958
      %v960 = vrcp.pop %v550
      %v961 = vmul.f32 %v550, %v960
      %v962 = vsub.f32 1.0, %v961
      %v963 = vmul.f32 %v960, %v962
      %v964 = vadd.f32 %v960, %v963
      %vm965 = vweird.f32 %v550
      %vm966 = vweird.f32 %v960
      %vm967 = vmor %vm965, %vm966
      %v968 = vsel %vm967, %v960, %v964
      %v969 = vand.u32 2147483647, %v550
      %vm970 = vcmp.eq.f32.partialorder %v969, 8.507059e+37
      %v971 = vand.u32 %v550, 2147483648
      %v972 = vor.u32 1.1754944e-38, %v971
      %v973 = vsel %vm970, %v972, %v968
      %v974 = vmul.f32 1.0, %v973
      %v975 = vrcp.pop %v551
      %v976 = vmul.f32 %v551, %v975
      %v977 = vsub.f32 1.0, %v976
      %v978 = vmul.f32 %v975, %v977
      %v979 = vadd.f32 %v975, %v978
      %vm980 = vweird.f32 %v551
      %vm981 = vweird.f32 %v975
      %vm982 = vmor %vm980, %vm981
      %v983 = vsel %vm982, %v975, %v979
      %v984 = vand.u32 2147483647, %v551
      %vm985 = vcmp.eq.f32.partialorder %v984, 8.507059e+37
      %v986 = vand.u32 %v551, 2147483648
      %v987 = vor.u32 1.1754944e-38, %v986
      %v988 = vsel %vm985, %v987, %v983
      %v989 = vmul.f32 1.0, %v988
      %v990 = vrcp.pop %v552
      %v991 = vmul.f32 %v552, %v990
      %v992 = vsub.f32 1.0, %v991
      %v993 = vmul.f32 %v990, %v992
      %v994 = vadd.f32 %v990, %v993
      %vm995 = vweird.f32 %v552
      %vm996 = vweird.f32 %v990
      %vm997 = vmor %vm995, %vm996
      %v998 = vsel %vm997, %v990, %v994
      %v999 = vand.u32 2147483647, %v552
      %vm1000 = vcmp.eq.f32.partialorder %v999, 8.507059e+37
      %v1001 = vand.u32 %v552, 2147483648
      %v1002 = vor.u32 1.1754944e-38, %v1001
      %v1003 = vsel %vm1000, %v1002, %v998
      %v1004 = vmul.f32 1.0, %v1003
      %v1005 = vrcp.pop %v553
      %v1006 = vmul.f32 %v553, %v1005
      %v1007 = vsub.f32 1.0, %v1006
      %v1008 = vmul.f32 %v1005, %v1007
      %v1009 = vadd.f32 %v1005, %v1008
      %vm1010 = vweird.f32 %v553
      %vm1011 = vweird.f32 %v1005
      %vm1012 = vmor %vm1010, %vm1011
      %v1013 = vsel %vm1012, %v1005, %v1009
      %v1014 = vand.u32 2147483647, %v553
      %vm1015 = vcmp.eq.f32.partialorder %v1014, 8.507059e+37
      %v1016 = vand.u32 %v553, 2147483648
      %v1017 = vor.u32 1.1754944e-38, %v1016
      %v1018 = vsel %vm1015, %v1017, %v1013
      %v1019 = vmul.f32 1.0, %v1018
      %v1020 = vrcp.pop %v554
      %v1021 = vmul.f32 %v554, %v1020
      %v1022 = vsub.f32 1.0, %v1021
      %v1023 = vmul.f32 %v1020, %v1022
      %v1024 = vadd.f32 %v1020, %v1023
      %vm1025 = vweird.f32 %v554
      %vm1026 = vweird.f32 %v1020
      %vm1027 = vmor %vm1025, %vm1026
      %v1028 = vsel %vm1027, %v1020, %v1024
      %v1029 = vand.u32 2147483647, %v554
      %vm1030 = vcmp.eq.f32.partialorder %v1029, 8.507059e+37
      %v1031 = vand.u32 %v554, 2147483648
      %v1032 = vor.u32 1.1754944e-38, %v1031
      %v1033 = vsel %vm1030, %v1032, %v1028
      %v1034 = vmul.f32 1.0, %v1033
      %v1035 = vmul.f32 %v332, %v569
      %v1036 = vmul.f32 %v335, %v584
      %v1037 = vmul.f32 %v338, %v599
      %v1038 = vmul.f32 %v341, %v614
      %v1039 = vmul.f32 %v344, %v629
      %v1040 = vmul.f32 %v347, %v644
      %v1041 = vmul.f32 %v350, %v659
      %v1042 = vmul.f32 %v353, %v674
      %v1043 = vmul.f32 %v356, %v689
      %v1044 = vmul.f32 %v359, %v704
      %v1045 = vmul.f32 %v362, %v719
      %v1046 = vmul.f32 %v365, %v734
      %v1047 = vmul.f32 %v368, %v749
      %v1048 = vmul.f32 %v371, %v764
      %v1049 = vmul.f32 %v374, %v779
      %v1050 = vmul.f32 %v377, %v794
      %v1051 = vmul.f32 %v380, %v809
      %v1052 = vmul.f32 %v383, %v824
      %v1053 = vmul.f32 %v386, %v839
      %v1054 = vmul.f32 %v389, %v854
      %v1055 = vmul.f32 %v392, %v869
      %v1056 = vmul.f32 %v395, %v884
      %v1057 = vmul.f32 %v398, %v899
      %v1058 = vmul.f32 %v401, %v914
      %v1059 = vmul.f32 %v404, %v929
      %v1060 = vmul.f32 %v407, %v944
      %v1061 = vmul.f32 %v410, %v959
      %v1062 = vmul.f32 %v413, %v974
      %v1063 = vmul.f32 %v416, %v989
      %v1064 = vmul.f32 %v419, %v1004
      %v1065 = vmul.f32 %v422, %v1019
      %v1066 = vmul.f32 %v425, %v1034
      %vm1067 = vcmask 130048
      %1068 = vst.msk [vmem:[%s174] sm:$0xff] %vm1067, %v1035
      %1069 = vst.msk [vmem:[%s174 + $0x8] sm:$0xff] %vm1067, %v1036
      %1070 = vst.msk [vmem:[%s174 + $0x20] sm:$0xff] %vm1067, %v1037
      %1071 = vst.msk [vmem:[%s174 + $0x28] sm:$0xff] %vm1067, %v1038
      %1072 = vst.msk [vmem:[%s174 + $0x40] sm:$0xff] %vm1067, %v1039
      %1073 = vst.msk [vmem:[%s174 + $0x48] sm:$0xff] %vm1067, %v1040
      %1074 = vst.msk [vmem:[%s174 + $0x60] sm:$0xff] %vm1067, %v1041
      %1075 = vst.msk [vmem:[%s174 + $0x68] sm:$0xff] %vm1067, %v1042
      %1076 = vst.msk [vmem:[%s174 + $0x80] sm:$0xff] %vm1067, %v1043
      %1077 = vst.msk [vmem:[%s174 + $0x88] sm:$0xff] %vm1067, %v1044
      %1078 = vst.msk [vmem:[%s174 + $0xa0] sm:$0xff] %vm1067, %v1045
      %1079 = vst.msk [vmem:[%s174 + $0xa8] sm:$0xff] %vm1067, %v1046
      %1080 = vst.msk [vmem:[%s174 + $0xc0] sm:$0xff] %vm1067, %v1047
      %1081 = vst.msk [vmem:[%s174 + $0xc8] sm:$0xff] %vm1067, %v1048
      %1082 = vst.msk [vmem:[%s174 + $0xe0] sm:$0xff] %vm1067, %v1049
      %1083 = vst.msk [vmem:[%s174 + $0xe8] sm:$0xff] %vm1067, %v1050
      %1084 = vst.msk [vmem:[%s174 + $0x100] sm:$0xff] %vm1067, %v1051
      %1085 = vst.msk [vmem:[%s174 + $0x108] sm:$0xff] %vm1067, %v1052
      %1086 = vst.msk [vmem:[%s174 + $0x120] sm:$0xff] %vm1067, %v1053
      %1087 = vst.msk [vmem:[%s174 + $0x128] sm:$0xff] %vm1067, %v1054
      %1088 = vst.msk [vmem:[%s174 + $0x140] sm:$0xff] %vm1067, %v1055
      %1089 = vst.msk [vmem:[%s174 + $0x148] sm:$0xff] %vm1067, %v1056
      %1090 = vst.msk [vmem:[%s174 + $0x160] sm:$0xff] %vm1067, %v1057
      %1091 = vst.msk [vmem:[%s174 + $0x168] sm:$0xff] %vm1067, %v1058
      %1092 = vst.msk [vmem:[%s174 + $0x180] sm:$0xff] %vm1067, %v1059
      %1093 = vst.msk [vmem:[%s174 + $0x188] sm:$0xff] %vm1067, %v1060
      %1094 = vst.msk [vmem:[%s174 + $0x1a0] sm:$0xff] %vm1067, %v1061
      %1095 = vst.msk [vmem:[%s174 + $0x1a8] sm:$0xff] %vm1067, %v1062
      %1096 = vst.msk [vmem:[%s174 + $0x1c0] sm:$0xff] %vm1067, %v1063
      %1097 = vst.msk [vmem:[%s174 + $0x1c8] sm:$0xff] %vm1067, %v1064
      %1098 = vst.msk [vmem:[%s174 + $0x1e0] sm:$0xff] %vm1067, %v1065
      %1099 = vst.msk [vmem:[%s174 + $0x1e8] sm:$0xff] %vm1067, %v1066
      %s1100 = scalar_lea.vmem %s1, 4
      %v1101 = vld [vmem:[%s1100] sm:$0xf]
      %v1103 = vsel %vm310, %v1101, 0
      %1105 = vmatpush.msra.mxu0 0.0
      %1106 = vmatpush.msra.mxu0 0.0
      %1107 = vmatpush.msra.mxu0 0.0
      %1108 = vmatpush.msra.mxu0 0.0
      %1109 = vmatpush.msra.mxu0 0.0
      %1110 = vmatpush.msra.mxu0 0.0
      %1111 = vmatpush.msra.mxu0 0.0
      %1112 = vmatpush.msra.mxu0 0.0
      %1113 = vmatpush.msra.mxu0 0.0
      %1114 = vmatpush.msra.mxu0 0.0
      %1115 = vmatpush.msra.mxu0 0.0
      %1116 = vmatpush.msra.mxu0 0.0
      %1117 = vmatpush.msra.mxu0 0.0
      %1118 = vmatpush.msra.mxu0 0.0
      %1119 = vmatpush.msra.mxu0 0.0
      %1120 = vmatpush.msra.mxu0 %v1103
      %1121 = vmatmul.f32.gmra.mxu0 %v215
      %v1122 = vpop.f32.mrf.mxu0
      %v1123 = vadd.f32 %v211, %v1122
      %1124 = vmatmul.f32.gmra.mxu0 %v218
      %v1125 = vpop.f32.mrf.mxu0
      %v1126 = vadd.f32 %v211, %v1125
      %1127 = vmatmul.f32.gmra.mxu0 %v221
      %v1128 = vpop.f32.mrf.mxu0
      %v1129 = vadd.f32 %v211, %v1128
      %1130 = vmatmul.f32.gmra.mxu0 %v224
      %v1131 = vpop.f32.mrf.mxu0
      %v1132 = vadd.f32 %v211, %v1131
      %1133 = vmatmul.f32.gmra.mxu0 %v227
      %v1134 = vpop.f32.mrf.mxu0
      %v1135 = vadd.f32 %v211, %v1134
      %1136 = vmatmul.f32.gmra.mxu0 %v230
      %v1137 = vpop.f32.mrf.mxu0
      %v1138 = vadd.f32 %v211, %v1137
      %1139 = vmatmul.f32.gmra.mxu0 %v233
      %v1140 = vpop.f32.mrf.mxu0
      %v1141 = vadd.f32 %v211, %v1140
      %1142 = vmatmul.f32.gmra.mxu0 %v236
      %v1143 = vpop.f32.mrf.mxu0
      %v1144 = vadd.f32 %v211, %v1143
      %1145 = vmatmul.f32.gmra.mxu0 %v239
      %v1146 = vpop.f32.mrf.mxu0
      %v1147 = vadd.f32 %v211, %v1146
      %1148 = vmatmul.f32.gmra.mxu0 %v242
      %v1149 = vpop.f32.mrf.mxu0
      %v1150 = vadd.f32 %v211, %v1149
      %1151 = vmatmul.f32.gmra.mxu0 %v245
      %v1152 = vpop.f32.mrf.mxu0
      %v1153 = vadd.f32 %v211, %v1152
      %1154 = vmatmul.f32.gmra.mxu0 %v248
      %v1155 = vpop.f32.mrf.mxu0
      %v1156 = vadd.f32 %v211, %v1155
      %1157 = vmatmul.f32.gmra.mxu0 %v251
      %v1158 = vpop.f32.mrf.mxu0
      %v1159 = vadd.f32 %v211, %v1158
      %1160 = vmatmul.f32.gmra.mxu0 %v254
      %v1161 = vpop.f32.mrf.mxu0
      %v1162 = vadd.f32 %v211, %v1161
      %1163 = vmatmul.f32.gmra.mxu0 %v257
      %v1164 = vpop.f32.mrf.mxu0
      %v1165 = vadd.f32 %v211, %v1164
      %1166 = vmatmul.f32.gmra.mxu0 %v260
      %v1167 = vpop.f32.mrf.mxu0
      %v1168 = vadd.f32 %v211, %v1167
      %1169 = vmatmul.f32.gmra.mxu0 %v263
      %v1170 = vpop.f32.mrf.mxu0
      %v1171 = vadd.f32 %v211, %v1170
      %1172 = vmatmul.f32.gmra.mxu0 %v266
      %v1173 = vpop.f32.mrf.mxu0
      %v1174 = vadd.f32 %v211, %v1173
      %1175 = vmatmul.f32.gmra.mxu0 %v269
      %v1176 = vpop.f32.mrf.mxu0
      %v1177 = vadd.f32 %v211, %v1176
      %1178 = vmatmul.f32.gmra.mxu0 %v272
      %v1179 = vpop.f32.mrf.mxu0
      %v1180 = vadd.f32 %v211, %v1179
      %1181 = vmatmul.f32.gmra.mxu0 %v275
      %v1182 = vpop.f32.mrf.mxu0
      %v1183 = vadd.f32 %v211, %v1182
      %1184 = vmatmul.f32.gmra.mxu0 %v278
      %v1185 = vpop.f32.mrf.mxu0
      %v1186 = vadd.f32 %v211, %v1185
      %1187 = vmatmul.f32.gmra.mxu0 %v281
      %v1188 = vpop.f32.mrf.mxu0
      %v1189 = vadd.f32 %v211, %v1188
      %1190 = vmatmul.f32.gmra.mxu0 %v284
      %v1191 = vpop.f32.mrf.mxu0
      %v1192 = vadd.f32 %v211, %v1191
      %1193 = vmatmul.f32.gmra.mxu0 %v287
      %v1194 = vpop.f32.mrf.mxu0
      %v1195 = vadd.f32 %v211, %v1194
      %1196 = vmatmul.f32.gmra.mxu0 %v290
      %v1197 = vpop.f32.mrf.mxu0
      %v1198 = vadd.f32 %v211, %v1197
      %1199 = vmatmul.f32.gmra.mxu0 %v293
      %v1200 = vpop.f32.mrf.mxu0
      %v1201 = vadd.f32 %v211, %v1200
      %1202 = vmatmul.f32.gmra.mxu0 %v296
      %v1203 = vpop.f32.mrf.mxu0
      %v1204 = vadd.f32 %v211, %v1203
      %1205 = vmatmul.f32.gmra.mxu0 %v299
      %v1206 = vpop.f32.mrf.mxu0
      %v1207 = vadd.f32 %v211, %v1206
      %1208 = vmatmul.f32.gmra.mxu0 %v302
      %v1209 = vpop.f32.mrf.mxu0
      %v1210 = vadd.f32 %v211, %v1209
      %1211 = vmatmul.f32.gmra.mxu0 %v305
      %v1212 = vpop.f32.mrf.mxu0
      %v1213 = vadd.f32 %v211, %v1212
      %1214 = vmatmul.f32.gmra.mxu0 %v308
      %v1215 = vpop.f32.mrf.mxu0
      %v1216 = vadd.f32 %v211, %v1215
      %1217 = vdwg.mxu0
      %v1218 = vxor.u32 %v1123, 2147483648
      %v1219 = vxor.u32 %v1126, 2147483648
      %v1220 = vxor.u32 %v1129, 2147483648
      %v1221 = vxor.u32 %v1132, 2147483648
      %v1222 = vxor.u32 %v1135, 2147483648
      %v1223 = vxor.u32 %v1138, 2147483648
      %v1224 = vxor.u32 %v1141, 2147483648
      %v1225 = vxor.u32 %v1144, 2147483648
      %v1226 = vxor.u32 %v1147, 2147483648
      %v1227 = vxor.u32 %v1150, 2147483648
      %v1228 = vxor.u32 %v1153, 2147483648
      %v1229 = vxor.u32 %v1156, 2147483648
      %v1230 = vxor.u32 %v1159, 2147483648
      %v1231 = vxor.u32 %v1162, 2147483648
      %v1232 = vxor.u32 %v1165, 2147483648
      %v1233 = vxor.u32 %v1168, 2147483648
      %v1234 = vxor.u32 %v1171, 2147483648
      %v1235 = vxor.u32 %v1174, 2147483648
      %v1236 = vxor.u32 %v1177, 2147483648
      %v1237 = vxor.u32 %v1180, 2147483648
      %v1238 = vxor.u32 %v1183, 2147483648
      %v1239 = vxor.u32 %v1186, 2147483648
      %v1240 = vxor.u32 %v1189, 2147483648
      %v1241 = vxor.u32 %v1192, 2147483648
      %v1242 = vxor.u32 %v1195, 2147483648
      %v1243 = vxor.u32 %v1198, 2147483648
      %v1244 = vxor.u32 %v1201, 2147483648
      %v1245 = vxor.u32 %v1204, 2147483648
      %v1246 = vxor.u32 %v1207, 2147483648
      %v1247 = vxor.u32 %v1210, 2147483648
      %v1248 = vxor.u32 %v1213, 2147483648
      %v1249 = vxor.u32 %v1216, 2147483648
      %v1250 = vmul.f32 %v1218, 1.442695
      %v1251 = vpow.pop %v1250
      %v1252 = vmul.f32 %v1219, 1.442695
      %v1253 = vpow.pop %v1252
      %v1254 = vmul.f32 %v1220, 1.442695
      %v1255 = vpow.pop %v1254
      %v1256 = vmul.f32 %v1221, 1.442695
      %v1257 = vpow.pop %v1256
      %v1258 = vmul.f32 %v1222, 1.442695
      %v1259 = vpow.pop %v1258
      %v1260 = vmul.f32 %v1223, 1.442695
      %v1261 = vpow.pop %v1260
      %v1262 = vmul.f32 %v1224, 1.442695
      %v1263 = vpow.pop %v1262
      %v1264 = vmul.f32 %v1225, 1.442695
      %v1265 = vpow.pop %v1264
      %v1266 = vmul.f32 %v1226, 1.442695
      %v1267 = vpow.pop %v1266
      %v1268 = vmul.f32 %v1227, 1.442695
      %v1269 = vpow.pop %v1268
      %v1270 = vmul.f32 %v1228, 1.442695
      %v1271 = vpow.pop %v1270
      %v1272 = vmul.f32 %v1229, 1.442695
      %v1273 = vpow.pop %v1272
      %v1274 = vmul.f32 %v1230, 1.442695
      %v1275 = vpow.pop %v1274
      %v1276 = vmul.f32 %v1231, 1.442695
      %v1277 = vpow.pop %v1276
      %v1278 = vmul.f32 %v1232, 1.442695
      %v1279 = vpow.pop %v1278
      %v1280 = vmul.f32 %v1233, 1.442695
      %v1281 = vpow.pop %v1280
      %v1282 = vmul.f32 %v1234, 1.442695
      %v1283 = vpow.pop %v1282
      %v1284 = vmul.f32 %v1235, 1.442695
      %v1285 = vpow.pop %v1284
      %v1286 = vmul.f32 %v1236, 1.442695
      %v1287 = vpow.pop %v1286
      %v1288 = vmul.f32 %v1237, 1.442695
      %v1289 = vpow.pop %v1288
      %v1290 = vmul.f32 %v1238, 1.442695
      %v1291 = vpow.pop %v1290
      %v1292 = vmul.f32 %v1239, 1.442695
      %v1293 = vpow.pop %v1292
      %v1294 = vmul.f32 %v1240, 1.442695
      %v1295 = vpow.pop %v1294
      %v1296 = vmul.f32 %v1241, 1.442695
      %v1297 = vpow.pop %v1296
      %v1298 = vmul.f32 %v1242, 1.442695
      %v1299 = vpow.pop %v1298
      %v1300 = vmul.f32 %v1243, 1.442695
      %v1301 = vpow.pop %v1300
      %v1302 = vmul.f32 %v1244, 1.442695
      %v1303 = vpow.pop %v1302
      %v1304 = vmul.f32 %v1245, 1.442695
      %v1305 = vpow.pop %v1304
      %v1306 = vmul.f32 %v1246, 1.442695
      %v1307 = vpow.pop %v1306
      %v1308 = vmul.f32 %v1247, 1.442695
      %v1309 = vpow.pop %v1308
      %v1310 = vmul.f32 %v1248, 1.442695
      %v1311 = vpow.pop %v1310
      %v1312 = vmul.f32 %v1249, 1.442695
      %v1313 = vpow.pop %v1312
      %v1314 = vadd.f32 %v1251, 1.0
      %v1315 = vadd.f32 %v1253, 1.0
      %v1316 = vadd.f32 %v1255, 1.0
      %v1317 = vadd.f32 %v1257, 1.0
      %v1318 = vadd.f32 %v1259, 1.0
      %v1319 = vadd.f32 %v1261, 1.0
      %v1320 = vadd.f32 %v1263, 1.0
      %v1321 = vadd.f32 %v1265, 1.0
      %v1322 = vadd.f32 %v1267, 1.0
      %v1323 = vadd.f32 %v1269, 1.0
      %v1324 = vadd.f32 %v1271, 1.0
      %v1325 = vadd.f32 %v1273, 1.0
      %v1326 = vadd.f32 %v1275, 1.0
      %v1327 = vadd.f32 %v1277, 1.0
      %v1328 = vadd.f32 %v1279, 1.0
      %v1329 = vadd.f32 %v1281, 1.0
      %v1330 = vadd.f32 %v1283, 1.0
      %v1331 = vadd.f32 %v1285, 1.0
      %v1332 = vadd.f32 %v1287, 1.0
      %v1333 = vadd.f32 %v1289, 1.0
      %v1334 = vadd.f32 %v1291, 1.0
      %v1335 = vadd.f32 %v1293, 1.0
      %v1336 = vadd.f32 %v1295, 1.0
      %v1337 = vadd.f32 %v1297, 1.0
      %v1338 = vadd.f32 %v1299, 1.0
      %v1339 = vadd.f32 %v1301, 1.0
      %v1340 = vadd.f32 %v1303, 1.0
      %v1341 = vadd.f32 %v1305, 1.0
      %v1342 = vadd.f32 %v1307, 1.0
      %v1343 = vadd.f32 %v1309, 1.0
      %v1344 = vadd.f32 %v1311, 1.0
      %v1345 = vadd.f32 %v1313, 1.0
      %v1346 = vrcp.pop %v1314
      %v1347 = vmul.f32 %v1314, %v1346
      %v1348 = vsub.f32 1.0, %v1347
      %v1349 = vmul.f32 %v1346, %v1348
      %v1350 = vadd.f32 %v1346, %v1349
      %vm1351 = vweird.f32 %v1314
      %vm1352 = vweird.f32 %v1346
      %vm1353 = vmor %vm1351, %vm1352
      %v1354 = vsel %vm1353, %v1346, %v1350
      %v1355 = vand.u32 2147483647, %v1314
      %vm1356 = vcmp.eq.f32.partialorder %v1355, 8.507059e+37
      %v1357 = vand.u32 %v1314, 2147483648
      %v1358 = vor.u32 1.1754944e-38, %v1357
      %v1359 = vsel %vm1356, %v1358, %v1354
      %v1360 = vmul.f32 1.0, %v1359
      %v1361 = vrcp.pop %v1315
      %v1362 = vmul.f32 %v1315, %v1361
      %v1363 = vsub.f32 1.0, %v1362
      %v1364 = vmul.f32 %v1361, %v1363
      %v1365 = vadd.f32 %v1361, %v1364
      %vm1366 = vweird.f32 %v1315
      %vm1367 = vweird.f32 %v1361
      %vm1368 = vmor %vm1366, %vm1367
      %v1369 = vsel %vm1368, %v1361, %v1365
      %v1370 = vand.u32 2147483647, %v1315
      %vm1371 = vcmp.eq.f32.partialorder %v1370, 8.507059e+37
      %v1372 = vand.u32 %v1315, 2147483648
      %v1373 = vor.u32 1.1754944e-38, %v1372
      %v1374 = vsel %vm1371, %v1373, %v1369
      %v1375 = vmul.f32 1.0, %v1374
      %v1376 = vrcp.pop %v1316
      %v1377 = vmul.f32 %v1316, %v1376
      %v1378 = vsub.f32 1.0, %v1377
      %v1379 = vmul.f32 %v1376, %v1378
      %v1380 = vadd.f32 %v1376, %v1379
      %vm1381 = vweird.f32 %v1316
      %vm1382 = vweird.f32 %v1376
      %vm1383 = vmor %vm1381, %vm1382
      %v1384 = vsel %vm1383, %v1376, %v1380
      %v1385 = vand.u32 2147483647, %v1316
      %vm1386 = vcmp.eq.f32.partialorder %v1385, 8.507059e+37
      %v1387 = vand.u32 %v1316, 2147483648
      %v1388 = vor.u32 1.1754944e-38, %v1387
      %v1389 = vsel %vm1386, %v1388, %v1384
      %v1390 = vmul.f32 1.0, %v1389
      %v1391 = vrcp.pop %v1317
      %v1392 = vmul.f32 %v1317, %v1391
      %v1393 = vsub.f32 1.0, %v1392
      %v1394 = vmul.f32 %v1391, %v1393
      %v1395 = vadd.f32 %v1391, %v1394
      %vm1396 = vweird.f32 %v1317
      %vm1397 = vweird.f32 %v1391
      %vm1398 = vmor %vm1396, %vm1397
      %v1399 = vsel %vm1398, %v1391, %v1395
      %v1400 = vand.u32 2147483647, %v1317
      %vm1401 = vcmp.eq.f32.partialorder %v1400, 8.507059e+37
      %v1402 = vand.u32 %v1317, 2147483648
      %v1403 = vor.u32 1.1754944e-38, %v1402
      %v1404 = vsel %vm1401, %v1403, %v1399
      %v1405 = vmul.f32 1.0, %v1404
      %v1406 = vrcp.pop %v1318
      %v1407 = vmul.f32 %v1318, %v1406
      %v1408 = vsub.f32 1.0, %v1407
      %v1409 = vmul.f32 %v1406, %v1408
      %v1410 = vadd.f32 %v1406, %v1409
      %vm1411 = vweird.f32 %v1318
      %vm1412 = vweird.f32 %v1406
      %vm1413 = vmor %vm1411, %vm1412
      %v1414 = vsel %vm1413, %v1406, %v1410
      %v1415 = vand.u32 2147483647, %v1318
      %vm1416 = vcmp.eq.f32.partialorder %v1415, 8.507059e+37
      %v1417 = vand.u32 %v1318, 2147483648
      %v1418 = vor.u32 1.1754944e-38, %v1417
      %v1419 = vsel %vm1416, %v1418, %v1414
      %v1420 = vmul.f32 1.0, %v1419
      %v1421 = vrcp.pop %v1319
      %v1422 = vmul.f32 %v1319, %v1421
      %v1423 = vsub.f32 1.0, %v1422
      %v1424 = vmul.f32 %v1421, %v1423
      %v1425 = vadd.f32 %v1421, %v1424
      %vm1426 = vweird.f32 %v1319
      %vm1427 = vweird.f32 %v1421
      %vm1428 = vmor %vm1426, %vm1427
      %v1429 = vsel %vm1428, %v1421, %v1425
      %v1430 = vand.u32 2147483647, %v1319
      %vm1431 = vcmp.eq.f32.partialorder %v1430, 8.507059e+37
      %v1432 = vand.u32 %v1319, 2147483648
      %v1433 = vor.u32 1.1754944e-38, %v1432
      %v1434 = vsel %vm1431, %v1433, %v1429
      %v1435 = vmul.f32 1.0, %v1434
      %v1436 = vrcp.pop %v1320
      %v1437 = vmul.f32 %v1320, %v1436
      %v1438 = vsub.f32 1.0, %v1437
      %v1439 = vmul.f32 %v1436, %v1438
      %v1440 = vadd.f32 %v1436, %v1439
      %vm1441 = vweird.f32 %v1320
      %vm1442 = vweird.f32 %v1436
      %vm1443 = vmor %vm1441, %vm1442
      %v1444 = vsel %vm1443, %v1436, %v1440
      %v1445 = vand.u32 2147483647, %v1320
      %vm1446 = vcmp.eq.f32.partialorder %v1445, 8.507059e+37
      %v1447 = vand.u32 %v1320, 2147483648
      %v1448 = vor.u32 1.1754944e-38, %v1447
      %v1449 = vsel %vm1446, %v1448, %v1444
      %v1450 = vmul.f32 1.0, %v1449
      %v1451 = vrcp.pop %v1321
      %v1452 = vmul.f32 %v1321, %v1451
      %v1453 = vsub.f32 1.0, %v1452
      %v1454 = vmul.f32 %v1451, %v1453
      %v1455 = vadd.f32 %v1451, %v1454
      %vm1456 = vweird.f32 %v1321
      %vm1457 = vweird.f32 %v1451
      %vm1458 = vmor %vm1456, %vm1457
      %v1459 = vsel %vm1458, %v1451, %v1455
      %v1460 = vand.u32 2147483647, %v1321
      %vm1461 = vcmp.eq.f32.partialorder %v1460, 8.507059e+37
      %v1462 = vand.u32 %v1321, 2147483648
      %v1463 = vor.u32 1.1754944e-38, %v1462
      %v1464 = vsel %vm1461, %v1463, %v1459
      %v1465 = vmul.f32 1.0, %v1464
      %v1466 = vrcp.pop %v1322
      %v1467 = vmul.f32 %v1322, %v1466
      %v1468 = vsub.f32 1.0, %v1467
      %v1469 = vmul.f32 %v1466, %v1468
      %v1470 = vadd.f32 %v1466, %v1469
      %vm1471 = vweird.f32 %v1322
      %vm1472 = vweird.f32 %v1466
      %vm1473 = vmor %vm1471, %vm1472
      %v1474 = vsel %vm1473, %v1466, %v1470
      %v1475 = vand.u32 2147483647, %v1322
      %vm1476 = vcmp.eq.f32.partialorder %v1475, 8.507059e+37
      %v1477 = vand.u32 %v1322, 2147483648
      %v1478 = vor.u32 1.1754944e-38, %v1477
      %v1479 = vsel %vm1476, %v1478, %v1474
      %v1480 = vmul.f32 1.0, %v1479
      %v1481 = vrcp.pop %v1323
      %v1482 = vmul.f32 %v1323, %v1481
      %v1483 = vsub.f32 1.0, %v1482
      %v1484 = vmul.f32 %v1481, %v1483
      %v1485 = vadd.f32 %v1481, %v1484
      %vm1486 = vweird.f32 %v1323
      %vm1487 = vweird.f32 %v1481
      %vm1488 = vmor %vm1486, %vm1487
      %v1489 = vsel %vm1488, %v1481, %v1485
      %v1490 = vand.u32 2147483647, %v1323
      %vm1491 = vcmp.eq.f32.partialorder %v1490, 8.507059e+37
      %v1492 = vand.u32 %v1323, 2147483648
      %v1493 = vor.u32 1.1754944e-38, %v1492
      %v1494 = vsel %vm1491, %v1493, %v1489
      %v1495 = vmul.f32 1.0, %v1494
      %v1496 = vrcp.pop %v1324
      %v1497 = vmul.f32 %v1324, %v1496
      %v1498 = vsub.f32 1.0, %v1497
      %v1499 = vmul.f32 %v1496, %v1498
      %v1500 = vadd.f32 %v1496, %v1499
      %vm1501 = vweird.f32 %v1324
      %vm1502 = vweird.f32 %v1496
      %vm1503 = vmor %vm1501, %vm1502
      %v1504 = vsel %vm1503, %v1496, %v1500
      %v1505 = vand.u32 2147483647, %v1324
      %vm1506 = vcmp.eq.f32.partialorder %v1505, 8.507059e+37
      %v1507 = vand.u32 %v1324, 2147483648
      %v1508 = vor.u32 1.1754944e-38, %v1507
      %v1509 = vsel %vm1506, %v1508, %v1504
      %v1510 = vmul.f32 1.0, %v1509
      %v1511 = vrcp.pop %v1325
      %v1512 = vmul.f32 %v1325, %v1511
      %v1513 = vsub.f32 1.0, %v1512
      %v1514 = vmul.f32 %v1511, %v1513
      %v1515 = vadd.f32 %v1511, %v1514
      %vm1516 = vweird.f32 %v1325
      %vm1517 = vweird.f32 %v1511
      %vm1518 = vmor %vm1516, %vm1517
      %v1519 = vsel %vm1518, %v1511, %v1515
      %v1520 = vand.u32 2147483647, %v1325
      %vm1521 = vcmp.eq.f32.partialorder %v1520, 8.507059e+37
      %v1522 = vand.u32 %v1325, 2147483648
      %v1523 = vor.u32 1.1754944e-38, %v1522
      %v1524 = vsel %vm1521, %v1523, %v1519
      %v1525 = vmul.f32 1.0, %v1524
      %v1526 = vrcp.pop %v1326
      %v1527 = vmul.f32 %v1326, %v1526
      %v1528 = vsub.f32 1.0, %v1527
      %v1529 = vmul.f32 %v1526, %v1528
      %v1530 = vadd.f32 %v1526, %v1529
      %vm1531 = vweird.f32 %v1326
      %vm1532 = vweird.f32 %v1526
      %vm1533 = vmor %vm1531, %vm1532
      %v1534 = vsel %vm1533, %v1526, %v1530
      %v1535 = vand.u32 2147483647, %v1326
      %vm1536 = vcmp.eq.f32.partialorder %v1535, 8.507059e+37
      %v1537 = vand.u32 %v1326, 2147483648
      %v1538 = vor.u32 1.1754944e-38, %v1537
      %v1539 = vsel %vm1536, %v1538, %v1534
      %v1540 = vmul.f32 1.0, %v1539
      %v1541 = vrcp.pop %v1327
      %v1542 = vmul.f32 %v1327, %v1541
      %v1543 = vsub.f32 1.0, %v1542
      %v1544 = vmul.f32 %v1541, %v1543
      %v1545 = vadd.f32 %v1541, %v1544
      %vm1546 = vweird.f32 %v1327
      %vm1547 = vweird.f32 %v1541
      %vm1548 = vmor %vm1546, %vm1547
      %v1549 = vsel %vm1548, %v1541, %v1545
      %v1550 = vand.u32 2147483647, %v1327
      %vm1551 = vcmp.eq.f32.partialorder %v1550, 8.507059e+37
      %v1552 = vand.u32 %v1327, 2147483648
      %v1553 = vor.u32 1.1754944e-38, %v1552
      %v1554 = vsel %vm1551, %v1553, %v1549
      %v1555 = vmul.f32 1.0, %v1554
      %v1556 = vrcp.pop %v1328
      %v1557 = vmul.f32 %v1328, %v1556
      %v1558 = vsub.f32 1.0, %v1557
      %v1559 = vmul.f32 %v1556, %v1558
      %v1560 = vadd.f32 %v1556, %v1559
      %vm1561 = vweird.f32 %v1328
      %vm1562 = vweird.f32 %v1556
      %vm1563 = vmor %vm1561, %vm1562
      %v1564 = vsel %vm1563, %v1556, %v1560
      %v1565 = vand.u32 2147483647, %v1328
      %vm1566 = vcmp.eq.f32.partialorder %v1565, 8.507059e+37
      %v1567 = vand.u32 %v1328, 2147483648
      %v1568 = vor.u32 1.1754944e-38, %v1567
      %v1569 = vsel %vm1566, %v1568, %v1564
      %v1570 = vmul.f32 1.0, %v1569
      %v1571 = vrcp.pop %v1329
      %v1572 = vmul.f32 %v1329, %v1571
      %v1573 = vsub.f32 1.0, %v1572
      %v1574 = vmul.f32 %v1571, %v1573
      %v1575 = vadd.f32 %v1571, %v1574
      %vm1576 = vweird.f32 %v1329
      %vm1577 = vweird.f32 %v1571
      %vm1578 = vmor %vm1576, %vm1577
      %v1579 = vsel %vm1578, %v1571, %v1575
      %v1580 = vand.u32 2147483647, %v1329
      %vm1581 = vcmp.eq.f32.partialorder %v1580, 8.507059e+37
      %v1582 = vand.u32 %v1329, 2147483648
      %v1583 = vor.u32 1.1754944e-38, %v1582
      %v1584 = vsel %vm1581, %v1583, %v1579
      %v1585 = vmul.f32 1.0, %v1584
      %v1586 = vrcp.pop %v1330
      %v1587 = vmul.f32 %v1330, %v1586
      %v1588 = vsub.f32 1.0, %v1587
      %v1589 = vmul.f32 %v1586, %v1588
      %v1590 = vadd.f32 %v1586, %v1589
      %vm1591 = vweird.f32 %v1330
      %vm1592 = vweird.f32 %v1586
      %vm1593 = vmor %vm1591, %vm1592
      %v1594 = vsel %vm1593, %v1586, %v1590
      %v1595 = vand.u32 2147483647, %v1330
      %vm1596 = vcmp.eq.f32.partialorder %v1595, 8.507059e+37
      %v1597 = vand.u32 %v1330, 2147483648
      %v1598 = vor.u32 1.1754944e-38, %v1597
      %v1599 = vsel %vm1596, %v1598, %v1594
      %v1600 = vmul.f32 1.0, %v1599
      %v1601 = vrcp.pop %v1331
      %v1602 = vmul.f32 %v1331, %v1601
      %v1603 = vsub.f32 1.0, %v1602
      %v1604 = vmul.f32 %v1601, %v1603
      %v1605 = vadd.f32 %v1601, %v1604
      %vm1606 = vweird.f32 %v1331
      %vm1607 = vweird.f32 %v1601
      %vm1608 = vmor %vm1606, %vm1607
      %v1609 = vsel %vm1608, %v1601, %v1605
      %v1610 = vand.u32 2147483647, %v1331
      %vm1611 = vcmp.eq.f32.partialorder %v1610, 8.507059e+37
      %v1612 = vand.u32 %v1331, 2147483648
      %v1613 = vor.u32 1.1754944e-38, %v1612
      %v1614 = vsel %vm1611, %v1613, %v1609
      %v1615 = vmul.f32 1.0, %v1614
      %v1616 = vrcp.pop %v1332
      %v1617 = vmul.f32 %v1332, %v1616
      %v1618 = vsub.f32 1.0, %v1617
      %v1619 = vmul.f32 %v1616, %v1618
      %v1620 = vadd.f32 %v1616, %v1619
      %vm1621 = vweird.f32 %v1332
      %vm1622 = vweird.f32 %v1616
      %vm1623 = vmor %vm1621, %vm1622
      %v1624 = vsel %vm1623, %v1616, %v1620
      %v1625 = vand.u32 2147483647, %v1332
      %vm1626 = vcmp.eq.f32.partialorder %v1625, 8.507059e+37
      %v1627 = vand.u32 %v1332, 2147483648
      %v1628 = vor.u32 1.1754944e-38, %v1627
      %v1629 = vsel %vm1626, %v1628, %v1624
      %v1630 = vmul.f32 1.0, %v1629
      %v1631 = vrcp.pop %v1333
      %v1632 = vmul.f32 %v1333, %v1631
      %v1633 = vsub.f32 1.0, %v1632
      %v1634 = vmul.f32 %v1631, %v1633
      %v1635 = vadd.f32 %v1631, %v1634
      %vm1636 = vweird.f32 %v1333
      %vm1637 = vweird.f32 %v1631
      %vm1638 = vmor %vm1636, %vm1637
      %v1639 = vsel %vm1638, %v1631, %v1635
      %v1640 = vand.u32 2147483647, %v1333
      %vm1641 = vcmp.eq.f32.partialorder %v1640, 8.507059e+37
      %v1642 = vand.u32 %v1333, 2147483648
      %v1643 = vor.u32 1.1754944e-38, %v1642
      %v1644 = vsel %vm1641, %v1643, %v1639
      %v1645 = vmul.f32 1.0, %v1644
      %v1646 = vrcp.pop %v1334
      %v1647 = vmul.f32 %v1334, %v1646
      %v1648 = vsub.f32 1.0, %v1647
      %v1649 = vmul.f32 %v1646, %v1648
      %v1650 = vadd.f32 %v1646, %v1649
      %vm1651 = vweird.f32 %v1334
      %vm1652 = vweird.f32 %v1646
      %vm1653 = vmor %vm1651, %vm1652
      %v1654 = vsel %vm1653, %v1646, %v1650
      %v1655 = vand.u32 2147483647, %v1334
      %vm1656 = vcmp.eq.f32.partialorder %v1655, 8.507059e+37
      %v1657 = vand.u32 %v1334, 2147483648
      %v1658 = vor.u32 1.1754944e-38, %v1657
      %v1659 = vsel %vm1656, %v1658, %v1654
      %v1660 = vmul.f32 1.0, %v1659
      %v1661 = vrcp.pop %v1335
      %v1662 = vmul.f32 %v1335, %v1661
      %v1663 = vsub.f32 1.0, %v1662
      %v1664 = vmul.f32 %v1661, %v1663
      %v1665 = vadd.f32 %v1661, %v1664
      %vm1666 = vweird.f32 %v1335
      %vm1667 = vweird.f32 %v1661
      %vm1668 = vmor %vm1666, %vm1667
      %v1669 = vsel %vm1668, %v1661, %v1665
      %v1670 = vand.u32 2147483647, %v1335
      %vm1671 = vcmp.eq.f32.partialorder %v1670, 8.507059e+37
      %v1672 = vand.u32 %v1335, 2147483648
      %v1673 = vor.u32 1.1754944e-38, %v1672
      %v1674 = vsel %vm1671, %v1673, %v1669
      %v1675 = vmul.f32 1.0, %v1674
      %v1676 = vrcp.pop %v1336
      %v1677 = vmul.f32 %v1336, %v1676
      %v1678 = vsub.f32 1.0, %v1677
      %v1679 = vmul.f32 %v1676, %v1678
      %v1680 = vadd.f32 %v1676, %v1679
      %vm1681 = vweird.f32 %v1336
      %vm1682 = vweird.f32 %v1676
      %vm1683 = vmor %vm1681, %vm1682
      %v1684 = vsel %vm1683, %v1676, %v1680
      %v1685 = vand.u32 2147483647, %v1336
      %vm1686 = vcmp.eq.f32.partialorder %v1685, 8.507059e+37
      %v1687 = vand.u32 %v1336, 2147483648
      %v1688 = vor.u32 1.1754944e-38, %v1687
      %v1689 = vsel %vm1686, %v1688, %v1684
      %v1690 = vmul.f32 1.0, %v1689
      %v1691 = vrcp.pop %v1337
      %v1692 = vmul.f32 %v1337, %v1691
      %v1693 = vsub.f32 1.0, %v1692
      %v1694 = vmul.f32 %v1691, %v1693
      %v1695 = vadd.f32 %v1691, %v1694
      %vm1696 = vweird.f32 %v1337
      %vm1697 = vweird.f32 %v1691
      %vm1698 = vmor %vm1696, %vm1697
      %v1699 = vsel %vm1698, %v1691, %v1695
      %v1700 = vand.u32 2147483647, %v1337
      %vm1701 = vcmp.eq.f32.partialorder %v1700, 8.507059e+37
      %v1702 = vand.u32 %v1337, 2147483648
      %v1703 = vor.u32 1.1754944e-38, %v1702
      %v1704 = vsel %vm1701, %v1703, %v1699
      %v1705 = vmul.f32 1.0, %v1704
      %v1706 = vrcp.pop %v1338
      %v1707 = vmul.f32 %v1338, %v1706
      %v1708 = vsub.f32 1.0, %v1707
      %v1709 = vmul.f32 %v1706, %v1708
      %v1710 = vadd.f32 %v1706, %v1709
      %vm1711 = vweird.f32 %v1338
      %vm1712 = vweird.f32 %v1706
      %vm1713 = vmor %vm1711, %vm1712
      %v1714 = vsel %vm1713, %v1706, %v1710
      %v1715 = vand.u32 2147483647, %v1338
      %vm1716 = vcmp.eq.f32.partialorder %v1715, 8.507059e+37
      %v1717 = vand.u32 %v1338, 2147483648
      %v1718 = vor.u32 1.1754944e-38, %v1717
      %v1719 = vsel %vm1716, %v1718, %v1714
      %v1720 = vmul.f32 1.0, %v1719
      %v1721 = vrcp.pop %v1339
      %v1722 = vmul.f32 %v1339, %v1721
      %v1723 = vsub.f32 1.0, %v1722
      %v1724 = vmul.f32 %v1721, %v1723
      %v1725 = vadd.f32 %v1721, %v1724
      %vm1726 = vweird.f32 %v1339
      %vm1727 = vweird.f32 %v1721
      %vm1728 = vmor %vm1726, %vm1727
      %v1729 = vsel %vm1728, %v1721, %v1725
      %v1730 = vand.u32 2147483647, %v1339
      %vm1731 = vcmp.eq.f32.partialorder %v1730, 8.507059e+37
      %v1732 = vand.u32 %v1339, 2147483648
      %v1733 = vor.u32 1.1754944e-38, %v1732
      %v1734 = vsel %vm1731, %v1733, %v1729
      %v1735 = vmul.f32 1.0, %v1734
      %v1736 = vrcp.pop %v1340
      %v1737 = vmul.f32 %v1340, %v1736
      %v1738 = vsub.f32 1.0, %v1737
      %v1739 = vmul.f32 %v1736, %v1738
      %v1740 = vadd.f32 %v1736, %v1739
      %vm1741 = vweird.f32 %v1340
      %vm1742 = vweird.f32 %v1736
      %vm1743 = vmor %vm1741, %vm1742
      %v1744 = vsel %vm1743, %v1736, %v1740
      %v1745 = vand.u32 2147483647, %v1340
      %vm1746 = vcmp.eq.f32.partialorder %v1745, 8.507059e+37
      %v1747 = vand.u32 %v1340, 2147483648
      %v1748 = vor.u32 1.1754944e-38, %v1747
      %v1749 = vsel %vm1746, %v1748, %v1744
      %v1750 = vmul.f32 1.0, %v1749
      %v1751 = vrcp.pop %v1341
      %v1752 = vmul.f32 %v1341, %v1751
      %v1753 = vsub.f32 1.0, %v1752
      %v1754 = vmul.f32 %v1751, %v1753
      %v1755 = vadd.f32 %v1751, %v1754
      %vm1756 = vweird.f32 %v1341
      %vm1757 = vweird.f32 %v1751
      %vm1758 = vmor %vm1756, %vm1757
      %v1759 = vsel %vm1758, %v1751, %v1755
      %v1760 = vand.u32 2147483647, %v1341
      %vm1761 = vcmp.eq.f32.partialorder %v1760, 8.507059e+37
      %v1762 = vand.u32 %v1341, 2147483648
      %v1763 = vor.u32 1.1754944e-38, %v1762
      %v1764 = vsel %vm1761, %v1763, %v1759
      %v1765 = vmul.f32 1.0, %v1764
      %v1766 = vrcp.pop %v1342
      %v1767 = vmul.f32 %v1342, %v1766
      %v1768 = vsub.f32 1.0, %v1767
      %v1769 = vmul.f32 %v1766, %v1768
      %v1770 = vadd.f32 %v1766, %v1769
      %vm1771 = vweird.f32 %v1342
      %vm1772 = vweird.f32 %v1766
      %vm1773 = vmor %vm1771, %vm1772
      %v1774 = vsel %vm1773, %v1766, %v1770
      %v1775 = vand.u32 2147483647, %v1342
      %vm1776 = vcmp.eq.f32.partialorder %v1775, 8.507059e+37
      %v1777 = vand.u32 %v1342, 2147483648
      %v1778 = vor.u32 1.1754944e-38, %v1777
      %v1779 = vsel %vm1776, %v1778, %v1774
      %v1780 = vmul.f32 1.0, %v1779
      %v1781 = vrcp.pop %v1343
      %v1782 = vmul.f32 %v1343, %v1781
      %v1783 = vsub.f32 1.0, %v1782
      %v1784 = vmul.f32 %v1781, %v1783
      %v1785 = vadd.f32 %v1781, %v1784
      %vm1786 = vweird.f32 %v1343
      %vm1787 = vweird.f32 %v1781
      %vm1788 = vmor %vm1786, %vm1787
      %v1789 = vsel %vm1788, %v1781, %v1785
      %v1790 = vand.u32 2147483647, %v1343
      %vm1791 = vcmp.eq.f32.partialorder %v1790, 8.507059e+37
      %v1792 = vand.u32 %v1343, 2147483648
      %v1793 = vor.u32 1.1754944e-38, %v1792
      %v1794 = vsel %vm1791, %v1793, %v1789
      %v1795 = vmul.f32 1.0, %v1794
      %v1796 = vrcp.pop %v1344
      %v1797 = vmul.f32 %v1344, %v1796
      %v1798 = vsub.f32 1.0, %v1797
      %v1799 = vmul.f32 %v1796, %v1798
      %v1800 = vadd.f32 %v1796, %v1799
      %vm1801 = vweird.f32 %v1344
      %vm1802 = vweird.f32 %v1796
      %vm1803 = vmor %vm1801, %vm1802
      %v1804 = vsel %vm1803, %v1796, %v1800
      %v1805 = vand.u32 2147483647, %v1344
      %vm1806 = vcmp.eq.f32.partialorder %v1805, 8.507059e+37
      %v1807 = vand.u32 %v1344, 2147483648
      %v1808 = vor.u32 1.1754944e-38, %v1807
      %v1809 = vsel %vm1806, %v1808, %v1804
      %v1810 = vmul.f32 1.0, %v1809
      %v1811 = vrcp.pop %v1345
      %v1812 = vmul.f32 %v1345, %v1811
      %v1813 = vsub.f32 1.0, %v1812
      %v1814 = vmul.f32 %v1811, %v1813
      %v1815 = vadd.f32 %v1811, %v1814
      %vm1816 = vweird.f32 %v1345
      %vm1817 = vweird.f32 %v1811
      %vm1818 = vmor %vm1816, %vm1817
      %v1819 = vsel %vm1818, %v1811, %v1815
      %v1820 = vand.u32 2147483647, %v1345
      %vm1821 = vcmp.eq.f32.partialorder %v1820, 8.507059e+37
      %v1822 = vand.u32 %v1345, 2147483648
      %v1823 = vor.u32 1.1754944e-38, %v1822
      %v1824 = vsel %vm1821, %v1823, %v1819
      %v1825 = vmul.f32 1.0, %v1824
      %v1826 = vmul.f32 %v1123, %v1360
      %v1827 = vmul.f32 %v1126, %v1375
      %v1828 = vmul.f32 %v1129, %v1390
      %v1829 = vmul.f32 %v1132, %v1405
      %v1830 = vmul.f32 %v1135, %v1420
      %v1831 = vmul.f32 %v1138, %v1435
      %v1832 = vmul.f32 %v1141, %v1450
      %v1833 = vmul.f32 %v1144, %v1465
      %v1834 = vmul.f32 %v1147, %v1480
      %v1835 = vmul.f32 %v1150, %v1495
      %v1836 = vmul.f32 %v1153, %v1510
      %v1837 = vmul.f32 %v1156, %v1525
      %v1838 = vmul.f32 %v1159, %v1540
      %v1839 = vmul.f32 %v1162, %v1555
      %v1840 = vmul.f32 %v1165, %v1570
      %v1841 = vmul.f32 %v1168, %v1585
      %v1842 = vmul.f32 %v1171, %v1600
      %v1843 = vmul.f32 %v1174, %v1615
      %v1844 = vmul.f32 %v1177, %v1630
      %v1845 = vmul.f32 %v1180, %v1645
      %v1846 = vmul.f32 %v1183, %v1660
      %v1847 = vmul.f32 %v1186, %v1675
      %v1848 = vmul.f32 %v1189, %v1690
      %v1849 = vmul.f32 %v1192, %v1705
      %v1850 = vmul.f32 %v1195, %v1720
      %v1851 = vmul.f32 %v1198, %v1735
      %v1852 = vmul.f32 %v1201, %v1750
      %v1853 = vmul.f32 %v1204, %v1765
      %v1854 = vmul.f32 %v1207, %v1780
      %v1855 = vmul.f32 %v1210, %v1795
      %v1856 = vmul.f32 %v1213, %v1810
      %v1857 = vmul.f32 %v1216, %v1825
      %s1858 = scalar_lea.vmem %s174, 16
      %1859 = vst.msk [vmem:[%s1858] sm:$0xff] %vm1067, %v1826
      %1860 = vst.msk [vmem:[%s1858 + $0x8] sm:$0xff] %vm1067, %v1827
      %1861 = vst.msk [vmem:[%s1858 + $0x20] sm:$0xff] %vm1067, %v1828
      %1862 = vst.msk [vmem:[%s1858 + $0x28] sm:$0xff] %vm1067, %v1829
      %1863 = vst.msk [vmem:[%s1858 + $0x40] sm:$0xff] %vm1067, %v1830
      %1864 = vst.msk [vmem:[%s1858 + $0x48] sm:$0xff] %vm1067, %v1831
      %1865 = vst.msk [vmem:[%s1858 + $0x60] sm:$0xff] %vm1067, %v1832
      %1866 = vst.msk [vmem:[%s1858 + $0x68] sm:$0xff] %vm1067, %v1833
      %1867 = vst.msk [vmem:[%s1858 + $0x80] sm:$0xff] %vm1067, %v1834
      %1868 = vst.msk [vmem:[%s1858 + $0x88] sm:$0xff] %vm1067, %v1835
      %1869 = vst.msk [vmem:[%s1858 + $0xa0] sm:$0xff] %vm1067, %v1836
      %1870 = vst.msk [vmem:[%s1858 + $0xa8] sm:$0xff] %vm1067, %v1837
      %1871 = vst.msk [vmem:[%s1858 + $0xc0] sm:$0xff] %vm1067, %v1838
      %1872 = vst.msk [vmem:[%s1858 + $0xc8] sm:$0xff] %vm1067, %v1839
      %1873 = vst.msk [vmem:[%s1858 + $0xe0] sm:$0xff] %vm1067, %v1840
      %1874 = vst.msk [vmem:[%s1858 + $0xe8] sm:$0xff] %vm1067, %v1841
      %1875 = vst.msk [vmem:[%s1858 + $0x100] sm:$0xff] %vm1067, %v1842
      %1876 = vst.msk [vmem:[%s1858 + $0x108] sm:$0xff] %vm1067, %v1843
      %1877 = vst.msk [vmem:[%s1858 + $0x120] sm:$0xff] %vm1067, %v1844
      %1878 = vst.msk [vmem:[%s1858 + $0x128] sm:$0xff] %vm1067, %v1845
      %1879 = vst.msk [vmem:[%s1858 + $0x140] sm:$0xff] %vm1067, %v1846
      %1880 = vst.msk [vmem:[%s1858 + $0x148] sm:$0xff] %vm1067, %v1847
      %1881 = vst.msk [vmem:[%s1858 + $0x160] sm:$0xff] %vm1067, %v1848
      %1882 = vst.msk [vmem:[%s1858 + $0x168] sm:$0xff] %vm1067, %v1849
      %1883 = vst.msk [vmem:[%s1858 + $0x180] sm:$0xff] %vm1067, %v1850
      %1884 = vst.msk [vmem:[%s1858 + $0x188] sm:$0xff] %vm1067, %v1851
      %1885 = vst.msk [vmem:[%s1858 + $0x1a0] sm:$0xff] %vm1067, %v1852
      %1886 = vst.msk [vmem:[%s1858 + $0x1a8] sm:$0xff] %vm1067, %v1853
      %1887 = vst.msk [vmem:[%s1858 + $0x1c0] sm:$0xff] %vm1067, %v1854
      %1888 = vst.msk [vmem:[%s1858 + $0x1c8] sm:$0xff] %vm1067, %v1855
      %1889 = vst.msk [vmem:[%s1858 + $0x1e0] sm:$0xff] %vm1067, %v1856
      %1890 = vst.msk [vmem:[%s1858 + $0x1e8] sm:$0xff] %vm1067, %v1857
      %s1891 = smul.u32 16, %s14
      %p1892 = scmp.lt.s32.totalorder %s1891, 31
      %s1893 = scalar_select %p1892, %s1891, 31
      %s1894 = smul.addr %s1893, 4
      %s1895 = smul.addr %s1894, 8
      %s1896 = scalar_lea.vmem %s3, %s1895
      // Predicated region
      $region33: #{tpu_custom_call.1} parent=31 // pred_check
        %p1897 = pneg %p100
      $region34: #{tpu_custom_call.1} parent=31 // pred_check_branch
        %1899 = sbr.rel (%p1897) target = $region36
      $region35: #{tpu_custom_call.1} parent=31 // pred_region
        %s1900 = smul.u32 16, %s14
      $region36: #{tpu_custom_call.1} parent=31 // pred_fallthru
        _
    $region32: #{tpu_custom_call.1} parent=5 // pred_fallthru
      _
    %p1901 = scmp.le.s32.totalorder 2, %s9
    // Predicated region
    $region37: #{tpu_custom_call.1} parent=5 // pred_check
      %p1902 = pneg %p1901
    $region38: #{tpu_custom_call.1} parent=5 // pred_check_branch
      %1904 = sbr.rel (%p1902) target = $region40
    $region39: #{tpu_custom_call.1} parent=5 // pred_region
      %s1905 = ssub.s32 %s9, 2
      // Predicated region
      $region41: #{tpu_custom_call.1} parent=39 // pred_check
        %p1906 = pneg %p106
      $region42: #{tpu_custom_call.1} parent=39 // pred_check_branch
        %1908 = sbr.rel (%p1906) target = $region44
      $region43: #{tpu_custom_call.1} parent=39 // pred_region
        %s1909 = smul.u32 16, %s15
        %p1910 = scmp.lt.s32.totalorder %s1909, 31
        %s1911 = scalar_select %p1910, %s1909, 31
        %s1912 = smul.addr %s1911, 4
        %s1913 = smul.addr %s1912, 8
        %s1914 = scalar_lea.vmem %s3, %s1913
      $region44: #{tpu_custom_call.1} parent=39 // pred_fallthru
        _
    $region40: #{tpu_custom_call.1} parent=5 // pred_fallthru
      _
  $region6: #{tpu_custom_call.1} parent=0 // loop_footer
    %s13 = sadd.s32 1, %s9
  $region7: #{tpu_custom_call.1} parent=0 // loop_footer_branch
    %8 = sbr.rel target = $region3
  $region8: #{tpu_custom_call.1} parent=0 // loop_exit
    _

</llo_original>
